<compile_context>
chip_gen: v7x
topology: tpu7x:2x2x1
jax: 0.10.0
libtpu: 0.0.40
codegen_flags: <defaults>
</compile_context>

<pallas_src>
import numpy as np
import jax
import jax.numpy as jnp
from jax.experimental import pallas as pl
from jax.experimental.pallas import tpu as pltpu

N_FFT = 512
WIN_LENGTH = 128
K_FREQ = N_FFT // 2 + 1                  # 257 one-sided bins (torchaudio layout)
K_PAD = 128                              # bins actually computed (>= CROP_H, lane-dense)
CROP_H = int(20 / 100 * K_FREQ + 10)     # 61 kept bins: image[:, :, :int(0.2*h+10), :]
FEAT_DIM = 2048
NUM_OUT = 6


# ----------------------------- parameter setup (glue) -----------------------------
def _hann_window_padded():
    # torch.hann_window(128, periodic=True), centrally zero-padded to n_fft=512.
    n = np.arange(WIN_LENGTH, dtype=np.float64)
    w = 0.5 - 0.5 * np.cos(2.0 * np.pi * n / WIN_LENGTH)
    full = np.zeros(N_FFT, dtype=np.float64)
    left = (N_FFT - WIN_LENGTH) // 2
    full[left:left + WIN_LENGTH] = w
    return full


def _dft_matrix_fused():
    # Windowed real-DFT basis for the first K_PAD bins, cos|sin fused into one
    # (N_FFT, 2*K_PAD) RHS so the STFT is one lane-dense MXU matmul per signal.
    # The crop to the first CROP_H bins is baked in (zeroed columns -> mag 0 -> sum 0).
    w = _hann_window_padded()
    n = np.arange(N_FFT, dtype=np.float64)[:, None]
    k = np.arange(K_PAD, dtype=np.float64)[None, :]
    ang = 2.0 * np.pi * n * k / N_FFT
    keep = (np.arange(K_PAD) < CROP_H).astype(np.float64)[None, :]
    cw = w[:, None] * np.cos(ang) * keep
    sw = -(w[:, None]) * np.sin(ang) * keep
    basis = np.concatenate([cw, sw], axis=1).astype(np.float32)   # (512, 256)
    return jnp.asarray(basis).astype(jnp.bfloat16)


def init_params(key):
    k1, k2, k3 = jax.random.split(key, 3)
    # TODO(synk): the pretrained X3D-L torch.hub backbone (conv blocks 0..4 and the head
    # convs) has no clean in-script Pallas equivalent; it is replaced by a deterministic
    # global-avg-pool + linear projection to 2048 features, preserving the (bs, 2048)
    # contract of the modified head (AdaptiveAvgPool3d(1) + Identity proj/act/pools).
    w_backbone = jax.random.normal(k1, (3, FEAT_DIM), jnp.float32) * 0.02
    b_backbone = jnp.zeros((1, FEAT_DIM), jnp.float32)
    bound = 1.0 / np.sqrt(FEAT_DIM)
    w_fc = jax.random.uniform(k2, (FEAT_DIM, NUM_OUT), jnp.float32, -bound, bound)
    b_fc = jax.random.uniform(k3, (1, NUM_OUT), jnp.float32, -bound, bound)
    return w_backbone, b_backbone, w_fc, b_fc


# ----------------------------- Pallas kernel -----------------------------
def _make_spec_head_kernel(pool_scale):
    def kernel(f10_ref, f50_ref, cws_ref, aff_ref, out_ref):
        # f10_ref/f50_ref: (1, 1, T_PAD, 512) bf16 frames for one (batch, channel);
        # cws_ref: (512, 256) bf16 crop-baked cos|sin basis; aff_ref: (2, 8, 128) f32
        # folded affine (row 0 = w_eff, row 1 = b_eff); out_ref: (1, 8, 128) f32.
        ch = pl.program_id(1)
        last = pl.num_programs(1) - 1
        cws = cws_ref[...]                                        # loaded once per step

        def mag_sum(frames):
            # One MXU push: frames (T_PAD, 512) @ cos|sin (512, 256) -> re|im (f32 acc).
            reim = jnp.dot(frames, cws, preferred_element_type=jnp.float32)
            re = reim[:, :K_PAD]                                  # 128-aligned splits
            im = reim[:, K_PAD:]
            mag = jnp.sqrt(re * re + im * im)                     # power=1 magnitude
            img = jnp.minimum(mag, 10000.0) * (1.0 / 1000.0)      # clip(...,0,1e4)/1000
            return jnp.sum(img)                                   # cropped/padded -> 0

        s = mag_sum(f10_ref[0, 0]) + mag_sum(f50_ref[0, 0])
        s_tile = s * jnp.ones((8, 128), jnp.float32)              # lane-dense splat

        @pl.when(ch == 0)
        def _():
            out_ref[0] = s_tile                                   # init accumulator

        @pl.when(ch != 0)
        def _():
            out_ref[0] = out_ref[0] + s_tile                      # accumulate channels

        @pl.when(ch == last)
        def _():
            # AdaptiveAvgPool3d(1) scale + folded backbone-stand-in + fc affine.
            pooled = out_ref[0] * pool_scale                      # (8, 128)
            out_ref[0] = pooled * aff_ref[0] + aff_ref[1]         # logits in row 0

    return kernel


def _spec_pool_head(frames10, frames50, aff, *, n, c, t_true):
    t_pad = frames10.shape[2]
    cws = _dft_matrix_fused()
    pool_scale = 1.0 / float(2 * c * CROP_H * t_true)
    return pl.pallas_call(
        _make_spec_head_kernel(pool_scale),
        out_shape=jax.ShapeDtypeStruct((n, 8, 128), jnp.float32),
        grid=(n, c),
        in_specs=[
            pl.BlockSpec((1, 1, t_pad, N_FFT), lambda b, ch: (b, ch, 0, 0)),
            pl.BlockSpec((1, 1, t_pad, N_FFT), lambda b, ch: (b, ch, 0, 0)),
            pl.BlockSpec((N_FFT, 2 * K_PAD), lambda b, ch: (0, 0)),
            pl.BlockSpec((2, 8, 128), lambda b, ch: (0, 0, 0)),
        ],
        out_specs=pl.BlockSpec((1, 8, 128), lambda b, ch: (b, 0, 0)),
        compiler_params=pltpu.CompilerParams(
            dimension_semantics=("parallel", "arbitrary")),
    )(frames10, frames50, cws, aff)


# ----------------------------- wrappers -----------------------------
def _frame_signal(x, hop, t_pad):
    # (N, C, L) -> (N, C, t_pad, N_FFT) bf16 frames, torch.stft(center=True, reflect).
    # Gather-free framing: chunk the padded signal by `hop` and concat shifted slices.
    pad = N_FFT // 2
    xp = jnp.pad(x, ((0, 0), (0, 0), (pad, pad)), mode="reflect")
    n, c, lp = xp.shape
    t = 1 + x.shape[-1] // hop
    n_pieces = -(-N_FFT // hop)                     # ceil(N_FFT / hop)
    n_chunks = t + n_pieces - 1
    need = n_chunks * hop
    if need > lp:
        xp = jnp.pad(xp, ((0, 0), (0, 0), (0, need - lp)))
    else:
        xp = xp[:, :, :need]
    chunks = xp.reshape(n, c, n_chunks, hop)
    pieces = [chunks[:, :, a:a + t, :] for a in range(n_pieces)]
    frames = jnp.concatenate(pieces, axis=-1)[:, :, :, :N_FFT]
    # Zero-pad frame rows t -> t_pad: exact (zero frames add 0 to the pooled sum) and
    # keeps the kernel block sublane-aligned (no masked tail loads/reduces).
    frames = jnp.pad(frames, ((0, 0), (0, 0), (0, t_pad - t), (0, 0)))
    return frames.astype(jnp.bfloat16)


@jax.jit
def net_forward(eeg, params):
    w1, b1, wf, bf = params
    n, c, L = eeg.shape

    t10 = 1 + 2000 // 10                            # Transform10s frames
    t50 = 1 + L // 50                               # Transform50s frames
    assert t10 == t50, (t10, t50)
    t = t10
    t_pad = ((t + 7) // 8) * 8                      # 201 -> 208 (sublane multiple)

    # Transform10s / Transform50s framing (bf16, padded rows).
    frames10 = _frame_signal(eeg[:, :, 4000:6000], hop=10, t_pad=t_pad)
    frames50 = _frame_signal(eeg, hop=50, t_pad=t_pad)

    # Fold backbone stand-in projection + dropout(identity) + fc into one tiny affine.
    # TODO(synk): nn.Dropout(0.5) is treated as inference-mode identity (no RNG masking).
    w_eff = jnp.dot(jnp.sum(w1, axis=0, keepdims=True), wf)      # (1, NUM_OUT)
    b_eff = jnp.dot(b1, wf) + bf                                 # (1, NUM_OUT)
    aff = jnp.zeros((2, 8, 128), jnp.float32)
    aff = aff.at[0, 0, :NUM_OUT].set(w_eff[0])
    aff = aff.at[1, 0, :NUM_OUT].set(b_eff[0])

    # One fused Pallas call: windowed real-DFT (crop baked into the basis), magnitude,
    # min/1000, per-channel accumulation, AdaptiveAvgPool scale and the folded affine.
    out = _spec_pool_head(frames10, frames50, aff, n=n, c=c, t_true=t)   # (n, 8, 128)
    return out[:, 0, :NUM_OUT]                                           # (bs, NUM_OUT)


if __name__ == "__main__":
    key = jax.random.PRNGKey(0)
    pkey, dkey = jax.random.split(key)
    params = init_params(pkey)

    # 2-channel EEG, 10000 samples (50 s @ 200 Hz); slice 4000:6000 is the middle 10 s.
    bs, c, L = 2, 2, 10000
    eeg = jax.random.normal(dkey, (bs, c, L), jnp.float32)

    out = net_forward(eeg, params)
    out = jax.block_until_ready(out)
    assert out.shape == (bs, NUM_OUT), out.shape
    assert bool(jnp.all(jnp.isfinite(out)))
    print("KERNEL_OK")
</pallas_src>

<mosaic_0001>
module attributes {stable_mosaic.version = 11 : i64} {
  func.func @kernel(%arg0: i32, %arg1: i32, %arg2: memref<1x1x208x512xbf16, #tpu.memory_space<vmem>>, %arg3: memref<1x1x208x512xbf16, #tpu.memory_space<vmem>>, %arg4: memref<512x256xbf16, #tpu.memory_space<vmem>>, %arg5: memref<2x8x128xf32, #tpu.memory_space<vmem>>, %arg6: memref<1x8x128xf32, #tpu.memory_space<vmem>>) attributes {dimension_semantics = [#tpu.dimension_semantics<parallel>, #tpu.dimension_semantics<arbitrary>], iteration_bounds = array<i64: 2, 2>, scalar_prefetch = 0 : i64, scratch_operands = 0 : i64, tpu.core_type = #tpu.core_type<tc>, window_params = [{transform_indices = @transform_0, window_bounds = array<i64: 1, 1, 208, 512>}, {transform_indices = @transform_1, window_bounds = array<i64: 1, 1, 208, 512>}, {pipeline_mode = #tpu.pipeline_mode<synchronous>, transform_indices = @transform_2, window_bounds = array<i64: 512, 256>}, {pipeline_mode = #tpu.pipeline_mode<synchronous>, transform_indices = @transform_3, window_bounds = array<i64: 2, 8, 128>}, {transform_indices = @transform_4, window_bounds = array<i64: 1, 8, 128>}]} {
    %c0 = arith.constant 0 : index
    %c0_0 = arith.constant 0 : index
    %0 = vector.load %arg4[%c0, %c0_0] : memref<512x256xbf16, #tpu.memory_space<vmem>>, vector<512x256xbf16>
    %c0_1 = arith.constant 0 : index
    %c0_2 = arith.constant 0 : index
    %c0_3 = arith.constant 0 : index
    %c0_4 = arith.constant 0 : index
    %1 = vector.load %arg2[%c0_1, %c0_2, %c0_3, %c0_4] : memref<1x1x208x512xbf16, #tpu.memory_space<vmem>>, vector<1x1x208x512xbf16>
    %2 = vector.shape_cast %1 : vector<1x1x208x512xbf16> to vector<208x512xbf16>
    %cst = arith.constant dense<0.000000e+00> : vector<208x256xf32>
    %3 = tpu.matmul %2, %0, %cst {dimension_numbers = #tpu.dot_dimension_numbers<[1], [0], [0], [1], [0, 0, 1, 1], [], []>} : vector<208x512xbf16>, vector<512x256xbf16>, vector<208x256xf32> -> vector<208x256xf32>
    %4 = vector.extract_strided_slice %3 {offsets = [0, 0], sizes = [208, 128], strides = [1, 1]} : vector<208x256xf32> to vector<208x128xf32>
    %5 = vector.extract_strided_slice %3 {offsets = [0, 128], sizes = [208, 128], strides = [1, 1]} : vector<208x256xf32> to vector<208x128xf32>
    %6 = arith.mulf %4, %4 : vector<208x128xf32>
    %7 = arith.mulf %5, %5 : vector<208x128xf32>
    %8 = arith.addf %6, %7 : vector<208x128xf32>
    %9 = math.sqrt %8 : vector<208x128xf32>
    %cst_5 = arith.constant 1.000000e+04 : f32
    %10 = vector.broadcast %cst_5 : f32 to vector<208x128xf32>
    %11 = arith.minimumf %9, %10 : vector<208x128xf32>
    %cst_6 = arith.constant 1.000000e-03 : f32
    %12 = vector.broadcast %cst_6 : f32 to vector<208x128xf32>
    %13 = arith.mulf %11, %12 : vector<208x128xf32>
    %14 = vector.shape_cast %13 : vector<208x128xf32> to vector<1x208x128xf32>
    %cst_7 = arith.constant dense<0.000000e+00> : vector<1xf32>
    %15 = vector.multi_reduction <add>, %14, %cst_7 [1, 2] : vector<1x208x128xf32> to vector<1xf32>
    %16 = vector.shape_cast %15 : vector<1xf32> to vector<1x1x1xf32>
    %17 = vector.extract %16[0, 0, 0] : f32 from vector<1x1x1xf32>
    %c0_8 = arith.constant 0 : index
    %c0_9 = arith.constant 0 : index
    %c0_10 = arith.constant 0 : index
    %c0_11 = arith.constant 0 : index
    %18 = vector.load %arg3[%c0_8, %c0_9, %c0_10, %c0_11] : memref<1x1x208x512xbf16, #tpu.memory_space<vmem>>, vector<1x1x208x512xbf16>
    %19 = vector.shape_cast %18 : vector<1x1x208x512xbf16> to vector<208x512xbf16>
    %cst_12 = arith.constant dense<0.000000e+00> : vector<208x256xf32>
    %20 = tpu.matmul %19, %0, %cst_12 {dimension_numbers = #tpu.dot_dimension_numbers<[1], [0], [0], [1], [0, 0, 1, 1], [], []>} : vector<208x512xbf16>, vector<512x256xbf16>, vector<208x256xf32> -> vector<208x256xf32>
    %21 = vector.extract_strided_slice %20 {offsets = [0, 0], sizes = [208, 128], strides = [1, 1]} : vector<208x256xf32> to vector<208x128xf32>
    %22 = vector.extract_strided_slice %20 {offsets = [0, 128], sizes = [208, 128], strides = [1, 1]} : vector<208x256xf32> to vector<208x128xf32>
    %23 = arith.mulf %21, %21 : vector<208x128xf32>
    %24 = arith.mulf %22, %22 : vector<208x128xf32>
    %25 = arith.addf %23, %24 : vector<208x128xf32>
    %26 = math.sqrt %25 : vector<208x128xf32>
    %cst_13 = arith.constant 1.000000e+04 : f32
    %27 = vector.broadcast %cst_13 : f32 to vector<208x128xf32>
    %28 = arith.minimumf %26, %27 : vector<208x128xf32>
    %cst_14 = arith.constant 1.000000e-03 : f32
    %29 = vector.broadcast %cst_14 : f32 to vector<208x128xf32>
    %30 = arith.mulf %28, %29 : vector<208x128xf32>
    %31 = vector.shape_cast %30 : vector<208x128xf32> to vector<1x208x128xf32>
    %cst_15 = arith.constant dense<0.000000e+00> : vector<1xf32>
    %32 = vector.multi_reduction <add>, %31, %cst_15 [1, 2] : vector<1x208x128xf32> to vector<1xf32>
    %33 = vector.shape_cast %32 : vector<1xf32> to vector<1x1x1xf32>
    %34 = vector.extract %33[0, 0, 0] : f32 from vector<1x1x1xf32>
    %35 = arith.addf %17, %34 : f32
    %cst_16 = arith.constant 1.000000e+00 : f32
    %36 = vector.broadcast %cst_16 : f32 to vector<8x128xf32>
    %37 = vector.broadcast %35 : f32 to vector<8x128xf32>
    %38 = arith.mulf %37, %36 : vector<8x128xf32>
    %c0_i32 = arith.constant 0 : i32
    %39 = arith.cmpi eq, %arg1, %c0_i32 : i32
    %40 = arith.extui %39 : i1 to i32
    %c0_i32_17 = arith.constant 0 : i32
    %41 = arith.cmpi ne, %40, %c0_i32_17 : i32
    scf.if %41 {
      %c0_21 = arith.constant 0 : index
      %c0_22 = arith.constant 0 : index
      %c0_23 = arith.constant 0 : index
      %48 = vector.load %arg6[%c0_21, %c0_22, %c0_23] : memref<1x8x128xf32, #tpu.memory_space<vmem>>, vector<1x8x128xf32>
      %49 = vector.shape_cast %48 : vector<1x8x128xf32> to vector<8x128xf32>
      %50 = vector.shape_cast %38 : vector<8x128xf32> to vector<1x8x128xf32>
      tpu.vector_store %arg6[%c0_21, %c0_22, %c0_23], %50 {strides = array<i32>} : memref<1x8x128xf32, #tpu.memory_space<vmem>>, vector<1x8x128xf32>,
    } else {
    }
    %c0_i32_18 = arith.constant 0 : i32
    %42 = arith.cmpi ne, %arg1, %c0_i32_18 : i32
    %43 = arith.extui %42 : i1 to i32
    %c0_i32_19 = arith.constant 0 : i32
    %44 = arith.cmpi ne, %43, %c0_i32_19 : i32
    scf.if %44 {
      %c0_21 = arith.constant 0 : index
      %c0_22 = arith.constant 0 : index
      %c0_23 = arith.constant 0 : index
      %48 = vector.load %arg6[%c0_21, %c0_22, %c0_23] : memref<1x8x128xf32, #tpu.memory_space<vmem>>, vector<1x8x128xf32>
      %49 = vector.shape_cast %48 : vector<1x8x128xf32> to vector<8x128xf32>
      %50 = arith.addf %49, %38 : vector<8x128xf32>
      %c0_24 = arith.constant 0 : index
      %c0_25 = arith.constant 0 : index
      %c0_26 = arith.constant 0 : index
      %51 = vector.load %arg6[%c0_24, %c0_25, %c0_26] : memref<1x8x128xf32, #tpu.memory_space<vmem>>, vector<1x8x128xf32>
      %52 = vector.shape_cast %51 : vector<1x8x128xf32> to vector<8x128xf32>
      %53 = vector.shape_cast %50 : vector<8x128xf32> to vector<1x8x128xf32>
      tpu.vector_store %arg6[%c0_24, %c0_25, %c0_26], %53 {strides = array<i32>} : memref<1x8x128xf32, #tpu.memory_space<vmem>>, vector<1x8x128xf32>,
    } else {
    }
    %c1_i32 = arith.constant 1 : i32
    %45 = arith.cmpi eq, %arg1, %c1_i32 : i32
    %46 = arith.extui %45 : i1 to i32
    %c0_i32_20 = arith.constant 0 : i32
    %47 = arith.cmpi ne, %46, %c0_i32_20 : i32
    scf.if %47 {
      %c0_21 = arith.constant 0 : index
      %c0_22 = arith.constant 0 : index
      %c0_23 = arith.constant 0 : index
      %48 = vector.load %arg6[%c0_21, %c0_22, %c0_23] : memref<1x8x128xf32, #tpu.memory_space<vmem>>, vector<1x8x128xf32>
      %49 = vector.shape_cast %48 : vector<1x8x128xf32> to vector<8x128xf32>
      %cst_24 = arith.constant 2.03898544E-5 : f32
      %50 = vector.broadcast %cst_24 : f32 to vector<8x128xf32>
      %51 = arith.mulf %49, %50 : vector<8x128xf32>
      %c0_25 = arith.constant 0 : index
      %c0_26 = arith.constant 0 : index
      %c0_27 = arith.constant 0 : index
      %52 = vector.load %arg5[%c0_25, %c0_26, %c0_27] : memref<2x8x128xf32, #tpu.memory_space<vmem>>, vector<1x8x128xf32>
      %53 = vector.shape_cast %52 : vector<1x8x128xf32> to vector<8x128xf32>
      %54 = arith.mulf %51, %53 : vector<8x128xf32>
      %c1 = arith.constant 1 : index
      %c0_28 = arith.constant 0 : index
      %c0_29 = arith.constant 0 : index
      %55 = vector.load %arg5[%c1, %c0_28, %c0_29] : memref<2x8x128xf32, #tpu.memory_space<vmem>>, vector<1x8x128xf32>
      %56 = vector.shape_cast %55 : vector<1x8x128xf32> to vector<8x128xf32>
      %57 = arith.addf %54, %56 : vector<8x128xf32>
      %c0_30 = arith.constant 0 : index
      %c0_31 = arith.constant 0 : index
      %c0_32 = arith.constant 0 : index
      %58 = vector.load %arg6[%c0_30, %c0_31, %c0_32] : memref<1x8x128xf32, #tpu.memory_space<vmem>>, vector<1x8x128xf32>
      %59 = vector.shape_cast %58 : vector<1x8x128xf32> to vector<8x128xf32>
      %60 = vector.shape_cast %57 : vector<8x128xf32> to vector<1x8x128xf32>
      tpu.vector_store %arg6[%c0_30, %c0_31, %c0_32], %60 {strides = array<i32>} : memref<1x8x128xf32, #tpu.memory_space<vmem>>, vector<1x8x128xf32>,
    } else {
    }
    return
  }
  func.func @transform_0(%arg0: i32, %arg1: i32) -> (i32, i32, i32, i32) {
    %c0_i32 = arith.constant 0 : i32
    %c0_i32_0 = arith.constant 0 : i32
    %c0_i32_1 = arith.constant 0 : i32
    return %arg0, %arg1, %c0_i32, %c0_i32_0 : i32, i32, i32, i32
  }
  func.func @transform_1(%arg0: i32, %arg1: i32) -> (i32, i32, i32, i32) {
    %c0_i32 = arith.constant 0 : i32
    %c0_i32_0 = arith.constant 0 : i32
    %c0_i32_1 = arith.constant 0 : i32
    return %arg0, %arg1, %c0_i32, %c0_i32_0 : i32, i32, i32, i32
  }
  func.func @transform_2(%arg0: i32, %arg1: i32) -> (i32, i32) {
    %c0_i32 = arith.constant 0 : i32
    %c0_i32_0 = arith.constant 0 : i32
    %c0_i32_1 = arith.constant 0 : i32
    return %c0_i32, %c0_i32_0 : i32, i32
  }
  func.func @transform_3(%arg0: i32, %arg1: i32) -> (i32, i32, i32) {
    %c0_i32 = arith.constant 0 : i32
    %c0_i32_0 = arith.constant 0 : i32
    %c0_i32_1 = arith.constant 0 : i32
    %c0_i32_2 = arith.constant 0 : i32
    return %c0_i32, %c0_i32_0, %c0_i32_1 : i32, i32, i32
  }
  func.func @transform_4(%arg0: i32, %arg1: i32) -> (i32, i32, i32) {
    %c0_i32 = arith.constant 0 : i32
    %c0_i32_0 = arith.constant 0 : i32
    %c0_i32_1 = arith.constant 0 : i32
    return %arg0, %c0_i32, %c0_i32_0 : i32, i32, i32
  }
}

</mosaic_0001>

<llo_original>
// kernel: net_forward.1
$region0: #{net_forward.1}
  #allocation0 [shape = 'u32[]', space=smem, size = 0x4, offset = 0x4, fixed_abs, tag = 'smem constant byte address 0x4 - core index']
  #allocation1 [shape = 'u32[144,128]{1,0:T(1,128)}', space=vmem, size = 0x12000, scoped, tag = 'internal scratch']
  %s0 = inlined_call_operand.vmem [shape: bf16[2,2,208,512], index: 0, kind: input, shape index: {}]
  %s1 = inlined_call_operand.vmem [shape: bf16[2,2,208,512], index: 1, kind: input, shape index: {}]
  %s2 = inlined_call_operand.vmem [shape: bf16[512,256], index: 2, kind: input, shape index: {}]
  %s3 = inlined_call_operand.vmem [shape: f32[2,8,128], index: 3, kind: input, shape index: {}]
  %s4 = inlined_call_operand.vmem [shape: f32[2,8,128], index: 4, kind: output, shape index: {}]
  %s5 = sld [smem:[#allocation0]]
  $region61: #{net_forward.1} parent=0
    _
  %s7 = ssub.s32 1, %s5
  %s8 = scalar_select 0, %s7, %s5
  loop: start=0, step=1, limit=6
  $region2: #{net_forward.1} parent=0 // loop_pre_header
    _
  $region3: #{net_forward.1} parent=0 // loop_header
    %s10 = sphi 0, %s14
    %p11 = scmp.ge.s32.totalorder %s10, 6
    %s17 = sphi 0, %s29
    %s18 = sphi 0, %s25
    %s19 = sphi 0, %s17
    %s20 = sphi 0, %s18
    %s21 = sphi 0, %s19
    %s22 = sphi 0, %s20
    %s34 = sphi 0, %s36
    %s37 = sphi 0, %s34
    %s38 = sphi 0, %s37
    %s54 = sphi 0, %s38
    %s62 = sphi 0, %s64
    %s65 = sphi 0, %s62
    %s66 = sphi 0, %s65
    %s82 = sphi 0, %s66
    %s86 = sphi 0, %s86
    %s88 = sphi 0, %s86
    %s89 = sphi 0, %s88
    %s103 = sphi 0, %s89
    %s107 = sphi 0, %s107
    %s109 = sphi 0, %s107
    %s110 = sphi 0, %s109
    %s124 = sphi 0, %s110
    %s130 = sphi 0, %s132
    %s133 = sphi 0, %s130
    %s134 = sphi 0, %s133
    %s150 = sphi 0, %s134
  $region4: #{net_forward.1} parent=0 // loop_header_branch
    %13 = sbr.rel (%p11) target = $region8
  $region5: #{net_forward.1} parent=0 // loop_body
    %s15 = ssub.s32 %s10, 1
    %s16 = ssub.s32 %s10, 2
    %s23 = sadd.s32 1, %s18
    %p24 = scmp.ge.s32.totalorder %s23, 2
    %s25 = scalar_select %p24, 0, %s23
    %s26 = sadd.s32 1, %s17
    %s27 = scalar_select %p24, %s26, %s17
    %p28 = scmp.ge.s32.totalorder %s27, 2
    %s29 = scalar_select %p28, 0, %s27
    %s30 = ssub.s32 %s17, %s29
    %s31 = ssub.s32 %s18, %s25
    %s32 = sor.u32 %s30, %s31
    %p33 = scmp.eq.s32.totalorder %s32, 0
    %s35 = sadd.s32 %s34, 1
    %s36 = scalar_select %p33, %s34, %s35
    %p39 = pneg %p33
    %p40 = scmp.eq.s32.totalorder %s10, 3
    %p41 = por %p39, %p40
    %p42 = scmp.ne.s32.totalorder %s34, %s37
    %p43 = scmp.eq.s32.totalorder %s10, 0
    %p44 = por %p42, %p43
    %p45 = scmp.ne.s32.totalorder %s34, %s37
    %p46 = scmp.eq.s32.totalorder %s15, 3
    %p47 = por %p45, %p46
    %p48 = scmp.ne.s32.totalorder %s37, %s38
    %p49 = scmp.eq.s32.totalorder %s15, 0
    %p50 = por %p48, %p49
    %p51 = scmp.ne.s32.totalorder %s37, %s38
    %p52 = scmp.eq.s32.totalorder %s16, 3
    %p53 = por %p51, %p52
    %p55 = scmp.ne.s32.totalorder %s38, %s54
    %p56 = scmp.eq.s32.totalorder %s16, 0
    %p57 = por %p55, %p56
    %s58 = ssub.s32 %s17, %s29
    %s59 = ssub.s32 %s18, %s25
    %s60 = sor.u32 %s58, %s59
    %p61 = scmp.eq.s32.totalorder %s60, 0
    %s63 = sadd.s32 %s62, 1
    %s64 = scalar_select %p61, %s62, %s63
    %p67 = pneg %p61
    %p68 = scmp.eq.s32.totalorder %s10, 3
    %p69 = por %p67, %p68
    %p70 = scmp.ne.s32.totalorder %s62, %s65
    %p71 = scmp.eq.s32.totalorder %s10, 0
    %p72 = por %p70, %p71
    %p73 = scmp.ne.s32.totalorder %s62, %s65
    %p74 = scmp.eq.s32.totalorder %s15, 3
    %p75 = por %p73, %p74
    %p76 = scmp.ne.s32.totalorder %s65, %s66
    %p77 = scmp.eq.s32.totalorder %s15, 0
    %p78 = por %p76, %p77
    %p79 = scmp.ne.s32.totalorder %s65, %s66
    %p80 = scmp.eq.s32.totalorder %s16, 3
    %p81 = por %p79, %p80
    %p83 = scmp.ne.s32.totalorder %s66, %s82
    %p84 = scmp.eq.s32.totalorder %s16, 0
    %p85 = por %p83, %p84
    %s87 = sadd.s32 %s86, 1
    %p90 = scmp.eq.s32.totalorder %s10, 3
    %p91 = scmp.ne.s32.totalorder %s86, %s88
    %p92 = scmp.eq.s32.totalorder %s10, 0
    %p93 = por %p91, %p92
    %p94 = scmp.ne.s32.totalorder %s86, %s88
    %p95 = scmp.eq.s32.totalorder %s15, 3
    %p96 = por %p94, %p95
    %p97 = scmp.ne.s32.totalorder %s88, %s89
    %p98 = scmp.eq.s32.totalorder %s15, 0
    %p99 = por %p97, %p98
    %p100 = scmp.ne.s32.totalorder %s88, %s89
    %p101 = scmp.eq.s32.totalorder %s16, 3
    %p102 = por %p100, %p101
    %p104 = scmp.ne.s32.totalorder %s89, %s103
    %p105 = scmp.eq.s32.totalorder %s16, 0
    %p106 = por %p104, %p105
    %s108 = sadd.s32 %s107, 1
    %p111 = scmp.eq.s32.totalorder %s10, 3
    %p112 = scmp.ne.s32.totalorder %s107, %s109
    %p113 = scmp.eq.s32.totalorder %s10, 0
    %p114 = por %p112, %p113
    %p115 = scmp.ne.s32.totalorder %s107, %s109
    %p116 = scmp.eq.s32.totalorder %s15, 3
    %p117 = por %p115, %p116
    %p118 = scmp.ne.s32.totalorder %s109, %s110
    %p119 = scmp.eq.s32.totalorder %s15, 0
    %p120 = por %p118, %p119
    %p121 = scmp.ne.s32.totalorder %s109, %s110
    %p122 = scmp.eq.s32.totalorder %s16, 3
    %p123 = por %p121, %p122
    %p125 = scmp.ne.s32.totalorder %s110, %s124
    %p126 = scmp.eq.s32.totalorder %s16, 0
    %p127 = por %p125, %p126
    %s128 = ssub.s32 %s17, %s29
    %p129 = scmp.eq.s32.totalorder %s128, 0
    %s131 = sadd.s32 %s130, 1
    %s132 = scalar_select %p129, %s130, %s131
    %p135 = pneg %p129
    %p136 = scmp.eq.s32.totalorder %s10, 3
    %p137 = por %p135, %p136
    %p138 = scmp.ne.s32.totalorder %s130, %s133
    %p139 = scmp.eq.s32.totalorder %s10, 0
    %p140 = por %p138, %p139
    %p141 = scmp.ne.s32.totalorder %s130, %s133
    %p142 = scmp.eq.s32.totalorder %s15, 3
    %p143 = por %p141, %p142
    %p144 = scmp.ne.s32.totalorder %s133, %s134
    %p145 = scmp.eq.s32.totalorder %s15, 0
    %p146 = por %p144, %p145
    %p147 = scmp.ne.s32.totalorder %s133, %s134
    %p148 = scmp.eq.s32.totalorder %s16, 3
    %p149 = por %p147, %p148
    %p151 = scmp.ne.s32.totalorder %s134, %s150
    %p152 = scmp.eq.s32.totalorder %s16, 0
    %p153 = por %p151, %p152
    %p154 = scmp.le.s32.totalorder 1, %s10
    %p155 = scmp.lt.s32.totalorder %s10, 5
    %p156 = pnand %p154, %p155
    %p157 = pneg %p156
    // Predicated region
    $region9: #{net_forward.1} parent=5 // pred_check
      _
    $region10: #{net_forward.1} parent=5 // pred_check_branch
      %159 = sbr.rel (%p156) target = $region12
    $region11: #{net_forward.1} parent=5 // pred_region
      %s160 = ssub.s32 %s10, 1
      // Predicated region
      $region13: #{net_forward.1} parent=11 // pred_check
        %p161 = pneg %p99
      $region14: #{net_forward.1} parent=11 // pred_check_branch
        %163 = sbr.rel (%p161) target = $region16
      $region15: #{net_forward.1} parent=11 // pred_region
        _
      $region16: #{net_forward.1} parent=11 // pred_fallthru
        _
      // Predicated region
      $region17: #{net_forward.1} parent=11 // pred_check
        %p164 = pneg %p120
      $region18: #{net_forward.1} parent=11 // pred_check_branch
        %166 = sbr.rel (%p164) target = $region20
      $region19: #{net_forward.1} parent=11 // pred_region
        _
      $region20: #{net_forward.1} parent=11 // pred_fallthru
        _
    $region12: #{net_forward.1} parent=5 // pred_fallthru
      _
    %p167 = scmp.lt.s32.totalorder %s10, 4
    // Predicated region
    $region21: #{net_forward.1} parent=5 // pred_check
      %p168 = pneg %p167
    $region22: #{net_forward.1} parent=5 // pred_check_branch
      %170 = sbr.rel (%p168) target = $region24
    $region23: #{net_forward.1} parent=5 // pred_region
      // Predicated region
      $region25: #{net_forward.1} parent=23 // pred_check
        %p171 = pneg %p44
      $region26: #{net_forward.1} parent=23 // pred_check_branch
        %173 = sbr.rel (%p171) target = $region28
      $region27: #{net_forward.1} parent=23 // pred_region
        %p174 = scmp.lt.s32.totalorder %s17, 1
        %s175 = scalar_select %p174, %s17, 1
        %p176 = scmp.lt.s32.totalorder %s18, 1
        %s177 = scalar_select %p176, %s18, 1
        %s178 = smul.addr %s177, 104
        %s179 = smul.addr %s175, 208
        %s180 = sadd.s32 %s178, %s179
        %s181 = smul.addr %s180, 4
        %s182 = scalar_lea.vmem %s0, %s181
      $region28: #{net_forward.1} parent=23 // pred_fallthru
        _
      // Predicated region
      $region29: #{net_forward.1} parent=23 // pred_check
        %p183 = pneg %p72
      $region30: #{net_forward.1} parent=23 // pred_check_branch
        %185 = sbr.rel (%p183) target = $region32
      $region31: #{net_forward.1} parent=23 // pred_region
        %p186 = scmp.lt.s32.totalorder %s17, 1
        %s187 = scalar_select %p186, %s17, 1
        %p188 = scmp.lt.s32.totalorder %s18, 1
        %s189 = scalar_select %p188, %s18, 1
        %s190 = smul.addr %s189, 104
        %s191 = smul.addr %s187, 208
        %s192 = sadd.s32 %s190, %s191
        %s193 = smul.addr %s192, 4
        %s194 = scalar_lea.vmem %s1, %s193
      $region32: #{net_forward.1} parent=23 // pred_fallthru
        _
    $region24: #{net_forward.1} parent=5 // pred_fallthru
      _
    %p195 = scmp.le.s32.totalorder 1, %s10
    %p196 = scmp.lt.s32.totalorder %s10, 5
    %p197 = pnand %p195, %p196
    %p198 = pneg %p197
    // Predicated region
    $region33: #{net_forward.1} parent=5 // pred_check
      _
    $region34: #{net_forward.1} parent=5 // pred_check_branch
      %200 = sbr.rel (%p197) target = $region36
    $region35: #{net_forward.1} parent=5 // pred_region
      %s201 = ssub.s32 %s10, 1
      %p202 = scmp.lt.s32.totalorder %s19, 1
      %s203 = scalar_select %p202, %s19, 1
      %p204 = scmp.lt.s32.totalorder %s20, 1
      %s205 = scalar_select %p204, %s20, 1
      %s206 = smul.addr %s205, 104
      %s207 = smul.addr %s203, 208
      %s208 = sadd.s32 %s206, %s207
      %s209 = smul.addr %s208, 4
      %s210 = scalar_lea.vmem %s0, %s209
      %p211 = pneg %p50
      %p212 = pneg %p47
      %p213 = scmp.lt.s32.totalorder %s19, 1
      %s214 = scalar_select %p213, %s19, 1
      %p215 = scmp.lt.s32.totalorder %s20, 1
      %s216 = scalar_select %p215, %s20, 1
      %s217 = smul.addr %s216, 104
      %s218 = smul.addr %s214, 208
      %s219 = sadd.s32 %s217, %s218
      %s220 = smul.addr %s219, 4
      %s221 = scalar_lea.vmem %s1, %s220
      %p222 = pneg %p78
      %p223 = pneg %p75
      %p224 = pneg %p99
      %p225 = pneg %p96
      %p226 = pneg %p120
      %p227 = pneg %p117
      %p228 = pneg %p146
      %p229 = pneg %p143
      %p230 = scmp.lt.s32.totalorder %s19, 1
      %s231 = scalar_select %p230, %s19, 1
      %s232 = smul.addr %s231, 8
      %s233 = scalar_lea.vmem %s4, %s232
      %p234 = scmp.lt.s32.totalorder %s19, 1
      %s235 = scalar_select %p234, %s19, 1
      %p236 = scmp.lt.s32.totalorder %s20, 1
      %s237 = scalar_select %p236, %s20, 1
      %s238 = smul.addr %s237, 104
      %s239 = smul.addr %s235, 208
      %s240 = sadd.s32 %s238, %s239
      %s241 = smul.addr %s240, 4
      %s242 = scalar_lea.vmem %s0, %s241
      %p243 = scmp.lt.s32.totalorder %s19, 1
      %s244 = scalar_select %p243, %s19, 1
      %p245 = scmp.lt.s32.totalorder %s20, 1
      %s246 = scalar_select %p245, %s20, 1
      %s247 = smul.addr %s246, 104
      %s248 = smul.addr %s244, 208
      %s249 = sadd.s32 %s247, %s248
      %s250 = smul.addr %s249, 4
      %s251 = scalar_lea.vmem %s1, %s250
      %p252 = scmp.lt.s32.totalorder %s19, 1
      %s253 = scalar_select %p252, %s19, 1
      %s254 = smul.addr %s253, 8
      %s255 = scalar_lea.vmem %s4, %s254
      %v256 = vld [vmem:[%s2] sm:$0xff]
      %v257 = vld [vmem:[%s2 + $0x8] sm:$0xff]
      %v258 = vld [vmem:[%s2 + $0x10] sm:$0xff]
      %v259 = vld [vmem:[%s2 + $0x18] sm:$0xff]
      %v260 = vld [vmem:[%s2 + $0x20] sm:$0xff]
      %v261 = vld [vmem:[%s2 + $0x28] sm:$0xff]
      %v262 = vld [vmem:[%s2 + $0x30] sm:$0xff]
      %v263 = vld [vmem:[%s2 + $0x38] sm:$0xff]
      %v264 = vld [vmem:[%s2 + $0x40] sm:$0xff]
      %v265 = vld [vmem:[%s2 + $0x48] sm:$0xff]
      %v266 = vld [vmem:[%s2 + $0x50] sm:$0xff]
      %v267 = vld [vmem:[%s2 + $0x58] sm:$0xff]
      %v268 = vld [vmem:[%s2 + $0x60] sm:$0xff]
      %v269 = vld [vmem:[%s2 + $0x68] sm:$0xff]
      %v270 = vld [vmem:[%s2 + $0x70] sm:$0xff]
      %v271 = vld [vmem:[%s2 + $0x78] sm:$0xff]
      %v272 = vld [vmem:[%s2 + $0x80] sm:$0xff]
      %v273 = vld [vmem:[%s2 + $0x88] sm:$0xff]
      %v274 = vld [vmem:[%s2 + $0x90] sm:$0xff]
      %v275 = vld [vmem:[%s2 + $0x98] sm:$0xff]
      %v276 = vld [vmem:[%s2 + $0xa0] sm:$0xff]
      %v277 = vld [vmem:[%s2 + $0xa8] sm:$0xff]
      %v278 = vld [vmem:[%s2 + $0xb0] sm:$0xff]
      %v279 = vld [vmem:[%s2 + $0xb8] sm:$0xff]
      %v280 = vld [vmem:[%s2 + $0xc0] sm:$0xff]
      %v281 = vld [vmem:[%s2 + $0xc8] sm:$0xff]
      %v282 = vld [vmem:[%s2 + $0xd0] sm:$0xff]
      %v283 = vld [vmem:[%s2 + $0xd8] sm:$0xff]
      %v284 = vld [vmem:[%s2 + $0xe0] sm:$0xff]
      %v285 = vld [vmem:[%s2 + $0xe8] sm:$0xff]
      %v286 = vld [vmem:[%s2 + $0xf0] sm:$0xff]
      %v287 = vld [vmem:[%s2 + $0xf8] sm:$0xff]
      %v288 = vld [vmem:[%s2 + $0x100] sm:$0xff]
      %v289 = vld [vmem:[%s2 + $0x108] sm:$0xff]
      %v290 = vld [vmem:[%s2 + $0x110] sm:$0xff]
      %v291 = vld [vmem:[%s2 + $0x118] sm:$0xff]
      %v292 = vld [vmem:[%s2 + $0x120] sm:$0xff]
      %v293 = vld [vmem:[%s2 + $0x128] sm:$0xff]
      %v294 = vld [vmem:[%s2 + $0x130] sm:$0xff]
      %v295 = vld [vmem:[%s2 + $0x138] sm:$0xff]
      %v296 = vld [vmem:[%s2 + $0x140] sm:$0xff]
      %v297 = vld [vmem:[%s2 + $0x148] sm:$0xff]
      %v298 = vld [vmem:[%s2 + $0x150] sm:$0xff]
      %v299 = vld [vmem:[%s2 + $0x158] sm:$0xff]
      %v300 = vld [vmem:[%s2 + $0x160] sm:$0xff]
      %v301 = vld [vmem:[%s2 + $0x168] sm:$0xff]
      %v302 = vld [vmem:[%s2 + $0x170] sm:$0xff]
      %v303 = vld [vmem:[%s2 + $0x178] sm:$0xff]
      %v304 = vld [vmem:[%s2 + $0x180] sm:$0xff]
      %v305 = vld [vmem:[%s2 + $0x188] sm:$0xff]
      %v306 = vld [vmem:[%s2 + $0x190] sm:$0xff]
      %v307 = vld [vmem:[%s2 + $0x198] sm:$0xff]
      %v308 = vld [vmem:[%s2 + $0x1a0] sm:$0xff]
      %v309 = vld [vmem:[%s2 + $0x1a8] sm:$0xff]
      %v310 = vld [vmem:[%s2 + $0x1b0] sm:$0xff]
      %v311 = vld [vmem:[%s2 + $0x1b8] sm:$0xff]
      %v312 = vld [vmem:[%s2 + $0x1c0] sm:$0xff]
      %v313 = vld [vmem:[%s2 + $0x1c8] sm:$0xff]
      %v314 = vld [vmem:[%s2 + $0x1d0] sm:$0xff]
      %v315 = vld [vmem:[%s2 + $0x1d8] sm:$0xff]
      %v316 = vld [vmem:[%s2 + $0x1e0] sm:$0xff]
      %v317 = vld [vmem:[%s2 + $0x1e8] sm:$0xff]
      %v318 = vld [vmem:[%s2 + $0x1f0] sm:$0xff]
      %v319 = vld [vmem:[%s2 + $0x1f8] sm:$0xff]
      %v320 = vld [vmem:[%s242] sm:$0xff]
      %v321 = vld [vmem:[%s242 + $0x8] sm:$0xff]
      %v322 = vld [vmem:[%s242 + $0x10] sm:$0xff]
      %v323 = vld [vmem:[%s242 + $0x18] sm:$0xff]
      %v324 = vld [vmem:[%s242 + $0x20] sm:$0xff]
      %v325 = vld [vmem:[%s242 + $0x28] sm:$0xff]
      %v326 = vld [vmem:[%s242 + $0x30] sm:$0xff]
      %v327 = vld [vmem:[%s242 + $0x38] sm:$0xff]
      %v328 = vld [vmem:[%s242 + $0x40] sm:$0xff]
      %v329 = vld [vmem:[%s242 + $0x48] sm:$0xff]
      %v330 = vld [vmem:[%s242 + $0x50] sm:$0xff]
      %v331 = vld [vmem:[%s242 + $0x58] sm:$0xff]
      %v332 = vld [vmem:[%s242 + $0x60] sm:$0xff]
      %v333 = vld [vmem:[%s242 + $0x68] sm:$0xff]
      %v334 = vld [vmem:[%s242 + $0x70] sm:$0xff]
      %v335 = vld [vmem:[%s242 + $0x78] sm:$0xff]
      %v336 = vld [vmem:[%s242 + $0x80] sm:$0xff]
      %v337 = vld [vmem:[%s242 + $0x88] sm:$0xff]
      %v338 = vld [vmem:[%s242 + $0x90] sm:$0xff]
      %v339 = vld [vmem:[%s242 + $0x98] sm:$0xff]
      %v340 = vld [vmem:[%s242 + $0xa0] sm:$0xff]
      %v341 = vld [vmem:[%s242 + $0xa8] sm:$0xff]
      %v342 = vld [vmem:[%s242 + $0xb0] sm:$0xff]
      %v343 = vld [vmem:[%s242 + $0xb8] sm:$0xff]
      %v344 = vld [vmem:[%s242 + $0xc0] sm:$0xff]
      %v345 = vld [vmem:[%s242 + $0xc8] sm:$0xff]
      %v346 = vld [vmem:[%s242 + $0xd0] sm:$0xff]
      %v347 = vld [vmem:[%s242 + $0xd8] sm:$0xff]
      %v348 = vld [vmem:[%s242 + $0xe0] sm:$0xff]
      %v349 = vld [vmem:[%s242 + $0xe8] sm:$0xff]
      %v350 = vld [vmem:[%s242 + $0xf0] sm:$0xff]
      %v351 = vld [vmem:[%s242 + $0xf8] sm:$0xff]
      %v352 = vld [vmem:[%s242 + $0x100] sm:$0xff]
      %v353 = vld [vmem:[%s242 + $0x108] sm:$0xff]
      %v354 = vld [vmem:[%s242 + $0x110] sm:$0xff]
      %v355 = vld [vmem:[%s242 + $0x118] sm:$0xff]
      %v356 = vld [vmem:[%s242 + $0x120] sm:$0xff]
      %v357 = vld [vmem:[%s242 + $0x128] sm:$0xff]
      %v358 = vld [vmem:[%s242 + $0x130] sm:$0xff]
      %v359 = vld [vmem:[%s242 + $0x138] sm:$0xff]
      %v360 = vld [vmem:[%s242 + $0x140] sm:$0xff]
      %v361 = vld [vmem:[%s242 + $0x148] sm:$0xff]
      %v362 = vld [vmem:[%s242 + $0x150] sm:$0xff]
      %v363 = vld [vmem:[%s242 + $0x158] sm:$0xff]
      %v364 = vld [vmem:[%s242 + $0x160] sm:$0xff]
      %v365 = vld [vmem:[%s242 + $0x168] sm:$0xff]
      %v366 = vld [vmem:[%s242 + $0x170] sm:$0xff]
      %v367 = vld [vmem:[%s242 + $0x178] sm:$0xff]
      %v368 = vld [vmem:[%s242 + $0x180] sm:$0xff]
      %v369 = vld [vmem:[%s242 + $0x188] sm:$0xff]
      %v370 = vld [vmem:[%s242 + $0x190] sm:$0xff]
      %v371 = vld [vmem:[%s242 + $0x198] sm:$0xff]
      %v424 = vunpack.c.l.b16 %v320
      %v425 = vunpack.c.h.b16 %v320
      %v426 = vunpack.c.l.b16 %v321
      %v427 = vunpack.c.h.b16 %v321
      %v428 = vunpack.c.l.b16 %v322
      %v429 = vunpack.c.h.b16 %v322
      %v430 = vunpack.c.l.b16 %v323
      %v431 = vunpack.c.h.b16 %v323
      %v432 = vunpack.c.l.b16 %v324
      %v433 = vunpack.c.h.b16 %v324
      %v434 = vunpack.c.l.b16 %v325
      %v435 = vunpack.c.h.b16 %v325
      %v436 = vunpack.c.l.b16 %v326
      %v437 = vunpack.c.h.b16 %v326
      %v438 = vunpack.c.l.b16 %v327
      %v439 = vunpack.c.h.b16 %v327
      %v440 = vunpack.c.l.b16 %v328
      %v441 = vunpack.c.h.b16 %v328
      %v442 = vunpack.c.l.b16 %v329
      %v443 = vunpack.c.h.b16 %v329
      %v444 = vunpack.c.l.b16 %v330
      %v445 = vunpack.c.h.b16 %v330
      %v446 = vunpack.c.l.b16 %v331
      %v447 = vunpack.c.h.b16 %v331
      %v448 = vunpack.c.l.b16 %v332
      %v449 = vunpack.c.h.b16 %v332
      %v450 = vunpack.c.l.b16 %v333
      %v451 = vunpack.c.h.b16 %v333
      %v452 = vunpack.c.l.b16 %v334
      %v453 = vunpack.c.h.b16 %v334
      %v454 = vunpack.c.l.b16 %v335
      %v455 = vunpack.c.h.b16 %v335
      %v456 = vunpack.c.l.b16 %v336
      %v457 = vunpack.c.h.b16 %v336
      %v458 = vunpack.c.l.b16 %v337
      %v459 = vunpack.c.h.b16 %v337
      %v460 = vunpack.c.l.b16 %v338
      %v461 = vunpack.c.h.b16 %v338
      %v462 = vunpack.c.l.b16 %v339
      %v463 = vunpack.c.h.b16 %v339
      %v464 = vunpack.c.l.b16 %v340
      %v465 = vunpack.c.h.b16 %v340
      %v466 = vunpack.c.l.b16 %v341
      %v467 = vunpack.c.h.b16 %v341
      %v468 = vunpack.c.l.b16 %v342
      %v469 = vunpack.c.h.b16 %v342
      %v470 = vunpack.c.l.b16 %v343
      %v471 = vunpack.c.h.b16 %v343
      %v472 = vunpack.c.l.b16 %v344
      %v473 = vunpack.c.h.b16 %v344
      %v474 = vunpack.c.l.b16 %v345
      %v475 = vunpack.c.h.b16 %v345
      %v476 = vunpack.c.l.b16 %v346
      %v477 = vunpack.c.h.b16 %v346
      %v478 = vunpack.c.l.b16 %v347
      %v479 = vunpack.c.h.b16 %v347
      %v480 = vunpack.c.l.b16 %v348
      %v481 = vunpack.c.h.b16 %v348
      %v482 = vunpack.c.l.b16 %v349
      %v483 = vunpack.c.h.b16 %v349
      %v484 = vunpack.c.l.b16 %v350
      %v485 = vunpack.c.h.b16 %v350
      %v486 = vunpack.c.l.b16 %v351
      %v487 = vunpack.c.h.b16 %v351
      %v488 = vunpack.c.l.b16 %v352
      %v489 = vunpack.c.h.b16 %v352
      %v490 = vunpack.c.l.b16 %v353
      %v491 = vunpack.c.h.b16 %v353
      %v492 = vunpack.c.l.b16 %v354
      %v493 = vunpack.c.h.b16 %v354
      %v494 = vunpack.c.l.b16 %v355
      %v495 = vunpack.c.h.b16 %v355
      %v496 = vunpack.c.l.b16 %v356
      %v497 = vunpack.c.h.b16 %v356
      %v498 = vunpack.c.l.b16 %v357
      %v499 = vunpack.c.h.b16 %v357
      %v500 = vunpack.c.l.b16 %v358
      %v501 = vunpack.c.h.b16 %v358
      %v502 = vunpack.c.l.b16 %v359
      %v503 = vunpack.c.h.b16 %v359
      %v504 = vunpack.c.l.b16 %v360
      %v505 = vunpack.c.h.b16 %v360
      %v506 = vunpack.c.l.b16 %v361
      %v507 = vunpack.c.h.b16 %v361
      %v508 = vunpack.c.l.b16 %v362
      %v509 = vunpack.c.h.b16 %v362
      %v510 = vunpack.c.l.b16 %v363
      %v511 = vunpack.c.h.b16 %v363
      %v512 = vunpack.c.l.b16 %v364
      %v513 = vunpack.c.h.b16 %v364
      %v514 = vunpack.c.l.b16 %v365
      %v515 = vunpack.c.h.b16 %v365
      %v516 = vunpack.c.l.b16 %v366
      %v517 = vunpack.c.h.b16 %v366
      %v518 = vunpack.c.l.b16 %v367
      %v519 = vunpack.c.h.b16 %v367
      %v520 = vunpack.c.l.b16 %v368
      %v521 = vunpack.c.h.b16 %v368
      %v522 = vunpack.c.l.b16 %v369
      %v523 = vunpack.c.h.b16 %v369
      %v524 = vunpack.c.l.b16 %v370
      %v525 = vunpack.c.h.b16 %v370
      %v526 = vunpack.c.l.b16 %v371
      %v527 = vunpack.c.h.b16 %v371
      %v528 = vpack.c.b16 %v428, %v424
      %v529 = vpack.c.b16 %v429, %v425
      %v530 = vpack.c.b16 %v430, %v426
      %v531 = vpack.c.b16 %v431, %v427
      %v532 = vpack.c.b16 %v436, %v432
      %v533 = vpack.c.b16 %v437, %v433
      %v534 = vpack.c.b16 %v438, %v434
      %v535 = vpack.c.b16 %v439, %v435
      %v536 = vpack.c.b16 %v444, %v440
      %v537 = vpack.c.b16 %v445, %v441
      %v538 = vpack.c.b16 %v446, %v442
      %v539 = vpack.c.b16 %v447, %v443
      %v540 = vpack.c.b16 %v452, %v448
      %v541 = vpack.c.b16 %v453, %v449
      %v542 = vpack.c.b16 %v454, %v450
      %v543 = vpack.c.b16 %v455, %v451
      %v544 = vpack.c.b16 %v460, %v456
      %v545 = vpack.c.b16 %v461, %v457
      %v546 = vpack.c.b16 %v462, %v458
      %v547 = vpack.c.b16 %v463, %v459
      %v548 = vpack.c.b16 %v468, %v464
      %v549 = vpack.c.b16 %v469, %v465
      %v550 = vpack.c.b16 %v470, %v466
      %v551 = vpack.c.b16 %v471, %v467
      %v552 = vpack.c.b16 %v476, %v472
      %v553 = vpack.c.b16 %v477, %v473
      %v554 = vpack.c.b16 %v478, %v474
      %v555 = vpack.c.b16 %v479, %v475
      %v556 = vpack.c.b16 %v484, %v480
      %v557 = vpack.c.b16 %v485, %v481
      %v558 = vpack.c.b16 %v486, %v482
      %v559 = vpack.c.b16 %v487, %v483
      %v560 = vpack.c.b16 %v492, %v488
      %v561 = vpack.c.b16 %v493, %v489
      %v562 = vpack.c.b16 %v494, %v490
      %v563 = vpack.c.b16 %v495, %v491
      %v564 = vpack.c.b16 %v500, %v496
      %v565 = vpack.c.b16 %v501, %v497
      %v566 = vpack.c.b16 %v502, %v498
      %v567 = vpack.c.b16 %v503, %v499
      %v568 = vpack.c.b16 %v508, %v504
      %v569 = vpack.c.b16 %v509, %v505
      %v570 = vpack.c.b16 %v510, %v506
      %v571 = vpack.c.b16 %v511, %v507
      %v572 = vpack.c.b16 %v516, %v512
      %v573 = vpack.c.b16 %v517, %v513
      %v574 = vpack.c.b16 %v518, %v514
      %v575 = vpack.c.b16 %v519, %v515
      %v576 = vpack.c.b16 %v524, %v520
      %v577 = vpack.c.b16 %v525, %v521
      %v578 = vpack.c.b16 %v526, %v522
      %v579 = vpack.c.b16 %v527, %v523
      %v696 = vunpack.c.l.b16 %v256
      %v697 = vunpack.c.h.b16 %v256
      %v698 = vunpack.c.l.b16 %v257
      %v699 = vunpack.c.h.b16 %v257
      %v700 = vunpack.c.l.b16 %v258
      %v701 = vunpack.c.h.b16 %v258
      %v702 = vunpack.c.l.b16 %v259
      %v703 = vunpack.c.h.b16 %v259
      %v704 = vunpack.c.l.b16 %v260
      %v705 = vunpack.c.h.b16 %v260
      %v706 = vunpack.c.l.b16 %v261
      %v707 = vunpack.c.h.b16 %v261
      %v708 = vunpack.c.l.b16 %v262
      %v709 = vunpack.c.h.b16 %v262
      %v710 = vunpack.c.l.b16 %v263
      %v711 = vunpack.c.h.b16 %v263
      %v712 = vunpack.c.l.b16 %v264
      %v713 = vunpack.c.h.b16 %v264
      %v714 = vunpack.c.l.b16 %v265
      %v715 = vunpack.c.h.b16 %v265
      %v716 = vunpack.c.l.b16 %v266
      %v717 = vunpack.c.h.b16 %v266
      %v718 = vunpack.c.l.b16 %v267
      %v719 = vunpack.c.h.b16 %v267
      %v720 = vunpack.c.l.b16 %v268
      %v721 = vunpack.c.h.b16 %v268
      %v722 = vunpack.c.l.b16 %v269
      %v723 = vunpack.c.h.b16 %v269
      %v724 = vunpack.c.l.b16 %v270
      %v725 = vunpack.c.h.b16 %v270
      %v726 = vunpack.c.l.b16 %v271
      %v727 = vunpack.c.h.b16 %v271
      %v728 = vunpack.c.l.b16 %v272
      %v729 = vunpack.c.h.b16 %v272
      %v730 = vunpack.c.l.b16 %v273
      %v731 = vunpack.c.h.b16 %v273
      %v732 = vunpack.c.l.b16 %v274
      %v733 = vunpack.c.h.b16 %v274
      %v734 = vunpack.c.l.b16 %v275
      %v735 = vunpack.c.h.b16 %v275
      %v736 = vunpack.c.l.b16 %v276
      %v737 = vunpack.c.h.b16 %v276
      %v738 = vunpack.c.l.b16 %v277
      %v739 = vunpack.c.h.b16 %v277
      %v740 = vunpack.c.l.b16 %v278
      %v741 = vunpack.c.h.b16 %v278
      %v742 = vunpack.c.l.b16 %v279
      %v743 = vunpack.c.h.b16 %v279
      %v744 = vunpack.c.l.b16 %v280
      %v745 = vunpack.c.h.b16 %v280
      %v746 = vunpack.c.l.b16 %v281
      %v747 = vunpack.c.h.b16 %v281
      %v748 = vunpack.c.l.b16 %v282
      %v749 = vunpack.c.h.b16 %v282
      %v750 = vunpack.c.l.b16 %v283
      %v751 = vunpack.c.h.b16 %v283
      %v752 = vunpack.c.l.b16 %v284
      %v753 = vunpack.c.h.b16 %v284
      %v754 = vunpack.c.l.b16 %v285
      %v755 = vunpack.c.h.b16 %v285
      %v756 = vunpack.c.l.b16 %v286
      %v757 = vunpack.c.h.b16 %v286
      %v758 = vunpack.c.l.b16 %v287
      %v759 = vunpack.c.h.b16 %v287
      %v760 = vunpack.c.l.b16 %v288
      %v761 = vunpack.c.h.b16 %v288
      %v762 = vunpack.c.l.b16 %v289
      %v763 = vunpack.c.h.b16 %v289
      %v764 = vunpack.c.l.b16 %v290
      %v765 = vunpack.c.h.b16 %v290
      %v766 = vunpack.c.l.b16 %v291
      %v767 = vunpack.c.h.b16 %v291
      %v768 = vunpack.c.l.b16 %v292
      %v769 = vunpack.c.h.b16 %v292
      %v770 = vunpack.c.l.b16 %v293
      %v771 = vunpack.c.h.b16 %v293
      %v772 = vunpack.c.l.b16 %v294
      %v773 = vunpack.c.h.b16 %v294
      %v774 = vunpack.c.l.b16 %v295
      %v775 = vunpack.c.h.b16 %v295
      %v776 = vunpack.c.l.b16 %v296
      %v777 = vunpack.c.h.b16 %v296
      %v778 = vunpack.c.l.b16 %v297
      %v779 = vunpack.c.h.b16 %v297
      %v780 = vunpack.c.l.b16 %v298
      %v781 = vunpack.c.h.b16 %v298
      %v782 = vunpack.c.l.b16 %v299
      %v783 = vunpack.c.h.b16 %v299
      %v784 = vunpack.c.l.b16 %v300
      %v785 = vunpack.c.h.b16 %v300
      %v786 = vunpack.c.l.b16 %v301
      %v787 = vunpack.c.h.b16 %v301
      %v788 = vunpack.c.l.b16 %v302
      %v789 = vunpack.c.h.b16 %v302
      %v790 = vunpack.c.l.b16 %v303
      %v791 = vunpack.c.h.b16 %v303
      %v792 = vunpack.c.l.b16 %v304
      %v793 = vunpack.c.h.b16 %v304
      %v794 = vunpack.c.l.b16 %v305
      %v795 = vunpack.c.h.b16 %v305
      %v796 = vunpack.c.l.b16 %v306
      %v797 = vunpack.c.h.b16 %v306
      %v798 = vunpack.c.l.b16 %v307
      %v799 = vunpack.c.h.b16 %v307
      %v800 = vunpack.c.l.b16 %v308
      %v801 = vunpack.c.h.b16 %v308
      %v802 = vunpack.c.l.b16 %v309
      %v803 = vunpack.c.h.b16 %v309
      %v804 = vunpack.c.l.b16 %v310
      %v805 = vunpack.c.h.b16 %v310
      %v806 = vunpack.c.l.b16 %v311
      %v807 = vunpack.c.h.b16 %v311
      %v808 = vunpack.c.l.b16 %v312
      %v809 = vunpack.c.h.b16 %v312
      %v810 = vunpack.c.l.b16 %v313
      %v811 = vunpack.c.h.b16 %v313
      %v812 = vunpack.c.l.b16 %v314
      %v813 = vunpack.c.h.b16 %v314
      %v814 = vunpack.c.l.b16 %v315
      %v815 = vunpack.c.h.b16 %v315
      %v816 = vunpack.c.l.b16 %v316
      %v817 = vunpack.c.h.b16 %v316
      %v818 = vunpack.c.l.b16 %v317
      %v819 = vunpack.c.h.b16 %v317
      %v820 = vunpack.c.l.b16 %v318
      %v821 = vunpack.c.h.b16 %v318
      %v822 = vunpack.c.l.b16 %v319
      %v823 = vunpack.c.h.b16 %v319
      %v824 = vpack.c.b16 %v698, %v696
      %v825 = vpack.c.b16 %v699, %v697
      %v826 = vpack.c.b16 %v702, %v700
      %v827 = vpack.c.b16 %v703, %v701
      %v828 = vpack.c.b16 %v706, %v704
      %v829 = vpack.c.b16 %v707, %v705
      %v830 = vpack.c.b16 %v710, %v708
      %v831 = vpack.c.b16 %v711, %v709
      %v832 = vpack.c.b16 %v714, %v712
      %v833 = vpack.c.b16 %v715, %v713
      %v834 = vpack.c.b16 %v718, %v716
      %v835 = vpack.c.b16 %v719, %v717
      %v836 = vpack.c.b16 %v722, %v720
      %v837 = vpack.c.b16 %v723, %v721
      %v838 = vpack.c.b16 %v726, %v724
      %v839 = vpack.c.b16 %v727, %v725
      %v840 = vpack.c.b16 %v730, %v728
      %v841 = vpack.c.b16 %v731, %v729
      %v842 = vpack.c.b16 %v734, %v732
      %v843 = vpack.c.b16 %v735, %v733
      %v844 = vpack.c.b16 %v738, %v736
      %v845 = vpack.c.b16 %v739, %v737
      %v846 = vpack.c.b16 %v742, %v740
      %v847 = vpack.c.b16 %v743, %v741
      %v848 = vpack.c.b16 %v746, %v744
      %v849 = vpack.c.b16 %v747, %v745
      %v850 = vpack.c.b16 %v750, %v748
      %v851 = vpack.c.b16 %v751, %v749
      %v852 = vpack.c.b16 %v754, %v752
      %v853 = vpack.c.b16 %v755, %v753
      %v854 = vpack.c.b16 %v758, %v756
      %v855 = vpack.c.b16 %v759, %v757
      %v856 = vpack.c.b16 %v762, %v760
      %v857 = vpack.c.b16 %v763, %v761
      %v858 = vpack.c.b16 %v766, %v764
      %v859 = vpack.c.b16 %v767, %v765
      %v860 = vpack.c.b16 %v770, %v768
      %v861 = vpack.c.b16 %v771, %v769
      %v862 = vpack.c.b16 %v774, %v772
      %v863 = vpack.c.b16 %v775, %v773
      %v864 = vpack.c.b16 %v778, %v776
      %v865 = vpack.c.b16 %v779, %v777
      %v866 = vpack.c.b16 %v782, %v780
      %v867 = vpack.c.b16 %v783, %v781
      %v868 = vpack.c.b16 %v786, %v784
      %v869 = vpack.c.b16 %v787, %v785
      %v870 = vpack.c.b16 %v790, %v788
      %v871 = vpack.c.b16 %v791, %v789
      %v872 = vpack.c.b16 %v794, %v792
      %v873 = vpack.c.b16 %v795, %v793
      %v874 = vpack.c.b16 %v798, %v796
      %v875 = vpack.c.b16 %v799, %v797
      %v876 = vpack.c.b16 %v802, %v800
      %v877 = vpack.c.b16 %v803, %v801
      %v878 = vpack.c.b16 %v806, %v804
      %v879 = vpack.c.b16 %v807, %v805
      %v880 = vpack.c.b16 %v810, %v808
      %v881 = vpack.c.b16 %v811, %v809
      %v882 = vpack.c.b16 %v814, %v812
      %v883 = vpack.c.b16 %v815, %v813
      %v884 = vpack.c.b16 %v818, %v816
      %v885 = vpack.c.b16 %v819, %v817
      %v886 = vpack.c.b16 %v822, %v820
      %v887 = vpack.c.b16 %v823, %v821
      %952 = vmatprep.subr.bf16.mxu0 %v825
      %953 = vmatpush1.bf16.msra.mxu0 %v824
      %954 = vmatprep.subr.bf16.mxu0 %v827
      %955 = vmatpush1.bf16.msra.mxu0 %v826
      %956 = vmatprep.subr.bf16.mxu0 %v829
      %957 = vmatpush1.bf16.msra.mxu0 %v828
      %958 = vmatprep.subr.bf16.mxu0 %v831
      %959 = vmatpush1.bf16.msra.mxu0 %v830
      %960 = vmatprep.subr.bf16.mxu0 %v833
      %961 = vmatpush1.bf16.msra.mxu0 %v832
      %962 = vmatprep.subr.bf16.mxu0 %v835
      %963 = vmatpush1.bf16.msra.mxu0 %v834
      %964 = vmatprep.subr.bf16.mxu0 %v837
      %965 = vmatpush1.bf16.msra.mxu0 %v836
      %966 = vmatprep.subr.bf16.mxu0 %v839
      %967 = vmatpush1.bf16.msra.mxu0 %v838
      %968 = vmatprep.subr.bf16.mxu0 %v841
      %969 = vmatpush1.bf16.msra.mxu0 %v840
      %970 = vmatprep.subr.bf16.mxu0 %v843
      %971 = vmatpush1.bf16.msra.mxu0 %v842
      %972 = vmatprep.subr.bf16.mxu0 %v845
      %973 = vmatpush1.bf16.msra.mxu0 %v844
      %974 = vmatprep.subr.bf16.mxu0 %v847
      %975 = vmatpush1.bf16.msra.mxu0 %v846
      %976 = vmatprep.subr.bf16.mxu0 %v849
      %977 = vmatpush1.bf16.msra.mxu0 %v848
      %978 = vmatprep.subr.bf16.mxu0 %v851
      %979 = vmatpush1.bf16.msra.mxu0 %v850
      %980 = vmatprep.subr.bf16.mxu0 %v853
      %981 = vmatpush1.bf16.msra.mxu0 %v852
      %982 = vmatprep.subr.bf16.mxu0 %v855
      %983 = vmatpush1.bf16.msra.mxu0 %v854
      %984 = vmatprep.mubr.bf16.mxu0 %v529
      %985 = vmatmul.mubr.bf16.gmra.mrb[0].mxu0 %v528
      %v986 = vpop.f32.mrb[0].mxu0
      %v987 = vadd.f32 0.0, %v986
      %v988 = vpop.f32.mrb[0].mxu0
      %v989 = vadd.f32 0.0, %v988
      %v990 = vpop.f32.mrb[0].mxu0
      %v991 = vadd.f32 0.0, %v990
      %v992 = vpop.f32.mrb[0].mxu0
      %v993 = vadd.f32 0.0, %v992
      %994 = vmatprep.mubr.bf16.mxu0 %v533
      %995 = vmatmul.mubr.bf16.gmra.mrb[0].mxu0 %v532
      %v996 = vpop.f32.mrb[0].mxu0
      %v997 = vadd.f32 0.0, %v996
      %v998 = vpop.f32.mrb[0].mxu0
      %v999 = vadd.f32 0.0, %v998
      %v1000 = vpop.f32.mrb[0].mxu0
      %v1001 = vadd.f32 0.0, %v1000
      %v1002 = vpop.f32.mrb[0].mxu0
      %v1003 = vadd.f32 0.0, %v1002
      %1004 = vmatprep.mubr.bf16.mxu0 %v537
      %1005 = vmatmul.mubr.bf16.gmra.mrb[0].mxu0 %v536
      %v1006 = vpop.f32.mrb[0].mxu0
      %v1007 = vadd.f32 0.0, %v1006
      %v1008 = vpop.f32.mrb[0].mxu0
      %v1009 = vadd.f32 0.0, %v1008
      %v1010 = vpop.f32.mrb[0].mxu0
      %v1011 = vadd.f32 0.0, %v1010
      %v1012 = vpop.f32.mrb[0].mxu0
      %v1013 = vadd.f32 0.0, %v1012
      %1014 = vmatprep.mubr.bf16.mxu0 %v541
      %1015 = vmatmul.mubr.bf16.gmra.mrb[0].mxu0 %v540
      %v1016 = vpop.f32.mrb[0].mxu0
      %v1017 = vadd.f32 0.0, %v1016
      %v1018 = vpop.f32.mrb[0].mxu0
      %v1019 = vadd.f32 0.0, %v1018
      %v1020 = vpop.f32.mrb[0].mxu0
      %v1021 = vadd.f32 0.0, %v1020
      %v1022 = vpop.f32.mrb[0].mxu0
      %v1023 = vadd.f32 0.0, %v1022
      %1024 = vmatprep.mubr.bf16.mxu0 %v545
      %1025 = vmatmul.mubr.bf16.gmra.mrb[0].mxu0 %v544
      %v1026 = vpop.f32.mrb[0].mxu0
      %v1027 = vadd.f32 0.0, %v1026
      %v1028 = vpop.f32.mrb[0].mxu0
      %v1029 = vadd.f32 0.0, %v1028
      %v1030 = vpop.f32.mrb[0].mxu0
      %v1031 = vadd.f32 0.0, %v1030
      %v1032 = vpop.f32.mrb[0].mxu0
      %v1033 = vadd.f32 0.0, %v1032
      %1034 = vmatprep.mubr.bf16.mxu0 %v549
      %1035 = vmatmul.mubr.bf16.gmra.mrb[0].mxu0 %v548
      %v1036 = vpop.f32.mrb[0].mxu0
      %v1037 = vadd.f32 0.0, %v1036
      %v1038 = vpop.f32.mrb[0].mxu0
      %v1039 = vadd.f32 0.0, %v1038
      %v1040 = vpop.f32.mrb[0].mxu0
      %v1041 = vadd.f32 0.0, %v1040
      %v1042 = vpop.f32.mrb[0].mxu0
      %v1043 = vadd.f32 0.0, %v1042
      %1044 = vmatprep.mubr.bf16.mxu0 %v553
      %1045 = vmatmul.mubr.bf16.gmra.mrb[0].mxu0 %v552
      %v1046 = vpop.f32.mrb[0].mxu0
      %v1047 = vadd.f32 0.0, %v1046
      %v1048 = vpop.f32.mrb[0].mxu0
      %v1049 = vadd.f32 0.0, %v1048
      %v1050 = vpop.f32.mrb[0].mxu0
      %v1051 = vadd.f32 0.0, %v1050
      %v1052 = vpop.f32.mrb[0].mxu0
      %v1053 = vadd.f32 0.0, %v1052
      %1054 = vmatprep.mubr.bf16.mxu0 %v557
      %1055 = vmatmul.mubr.bf16.gmra.mrb[0].mxu0 %v556
      %v1056 = vpop.f32.mrb[0].mxu0
      %v1057 = vadd.f32 0.0, %v1056
      %v1058 = vpop.f32.mrb[0].mxu0
      %v1059 = vadd.f32 0.0, %v1058
      %v1060 = vpop.f32.mrb[0].mxu0
      %v1061 = vadd.f32 0.0, %v1060
      %v1062 = vpop.f32.mrb[0].mxu0
      %v1063 = vadd.f32 0.0, %v1062
      %1064 = vmatprep.mubr.bf16.mxu0 %v561
      %1065 = vmatmul.mubr.bf16.gmra.mrb[0].mxu0 %v560
      %v1066 = vpop.f32.mrb[0].mxu0
      %v1067 = vadd.f32 0.0, %v1066
      %v1068 = vpop.f32.mrb[0].mxu0
      %v1069 = vadd.f32 0.0, %v1068
      %v1070 = vpop.f32.mrb[0].mxu0
      %v1071 = vadd.f32 0.0, %v1070
      %v1072 = vpop.f32.mrb[0].mxu0
      %v1073 = vadd.f32 0.0, %v1072
      %1074 = vmatprep.mubr.bf16.mxu0 %v565
      %1075 = vmatmul.mubr.bf16.gmra.mrb[0].mxu0 %v564
      %v1076 = vpop.f32.mrb[0].mxu0
      %v1077 = vadd.f32 0.0, %v1076
      %v1078 = vpop.f32.mrb[0].mxu0
      %v1079 = vadd.f32 0.0, %v1078
      %v1080 = vpop.f32.mrb[0].mxu0
      %v1081 = vadd.f32 0.0, %v1080
      %v1082 = vpop.f32.mrb[0].mxu0
      %v1083 = vadd.f32 0.0, %v1082
      %1084 = vmatprep.mubr.bf16.mxu0 %v569
      %1085 = vmatmul.mubr.bf16.gmra.mrb[0].mxu0 %v568
      %v1086 = vpop.f32.mrb[0].mxu0
      %v1087 = vadd.f32 0.0, %v1086
      %v1088 = vpop.f32.mrb[0].mxu0
      %v1089 = vadd.f32 0.0, %v1088
      %v1090 = vpop.f32.mrb[0].mxu0
      %v1091 = vadd.f32 0.0, %v1090
      %v1092 = vpop.f32.mrb[0].mxu0
      %v1093 = vadd.f32 0.0, %v1092
      %1094 = vmatprep.mubr.bf16.mxu0 %v573
      %1095 = vmatmul.mubr.bf16.gmra.mrb[0].mxu0 %v572
      %v1096 = vpop.f32.mrb[0].mxu0
      %v1097 = vadd.f32 0.0, %v1096
      %v1098 = vpop.f32.mrb[0].mxu0
      %v1099 = vadd.f32 0.0, %v1098
      %v1100 = vpop.f32.mrb[0].mxu0
      %v1101 = vadd.f32 0.0, %v1100
      %v1102 = vpop.f32.mrb[0].mxu0
      %v1103 = vadd.f32 0.0, %v1102
      %1104 = vmatprep.mubr.bf16.mxu0 %v577
      %1105 = vmatmul.mubr.bf16.gmra.mrb[0].mxu0 %v576
      %v1106 = vpop.f32.mrb[0].mxu0
      %v1107 = vadd.f32 0.0, %v1106
      %v1108 = vpop.f32.mrb[0].mxu0
      %v1109 = vadd.f32 0.0, %v1108
      %v1110 = vpop.f32.mrb[0].mxu0
      %v1111 = vadd.f32 0.0, %v1110
      %v1112 = vpop.f32.mrb[0].mxu0
      %v1113 = vadd.f32 0.0, %v1112
      %1114 = vdwg.mxu0
      %1115 = vmatprep.subr.bf16.mxu0 %v857
      %1116 = vmatpush1.bf16.msra.mxu0 %v856
      %1117 = vmatprep.subr.bf16.mxu0 %v859
      %1118 = vmatpush1.bf16.msra.mxu0 %v858
      %1119 = vmatprep.subr.bf16.mxu0 %v861
      %1120 = vmatpush1.bf16.msra.mxu0 %v860
      %1121 = vmatprep.subr.bf16.mxu0 %v863
      %1122 = vmatpush1.bf16.msra.mxu0 %v862
      %1123 = vmatprep.subr.bf16.mxu0 %v865
      %1124 = vmatpush1.bf16.msra.mxu0 %v864
      %1125 = vmatprep.subr.bf16.mxu0 %v867
      %1126 = vmatpush1.bf16.msra.mxu0 %v866
      %1127 = vmatprep.subr.bf16.mxu0 %v869
      %1128 = vmatpush1.bf16.msra.mxu0 %v868
      %1129 = vmatprep.subr.bf16.mxu0 %v871
      %1130 = vmatpush1.bf16.msra.mxu0 %v870
      %1131 = vmatprep.subr.bf16.mxu0 %v873
      %1132 = vmatpush1.bf16.msra.mxu0 %v872
      %1133 = vmatprep.subr.bf16.mxu0 %v875
      %1134 = vmatpush1.bf16.msra.mxu0 %v874
      %1135 = vmatprep.subr.bf16.mxu0 %v877
      %1136 = vmatpush1.bf16.msra.mxu0 %v876
      %1137 = vmatprep.subr.bf16.mxu0 %v879
      %1138 = vmatpush1.bf16.msra.mxu0 %v878
      %1139 = vmatprep.subr.bf16.mxu0 %v881
      %1140 = vmatpush1.bf16.msra.mxu0 %v880
      %1141 = vmatprep.subr.bf16.mxu0 %v883
      %1142 = vmatpush1.bf16.msra.mxu0 %v882
      %1143 = vmatprep.subr.bf16.mxu0 %v885
      %1144 = vmatpush1.bf16.msra.mxu0 %v884
      %1145 = vmatprep.subr.bf16.mxu0 %v887
      %1146 = vmatpush1.bf16.msra.mxu0 %v886
      %1147 = vmatprep.mubr.bf16.mxu0 %v531
      %1148 = vmatmul.mubr.bf16.gmra.mrb[0].mxu0 %v530
      %v1149 = vpop.f32.mrb[0].mxu0
      %v1150 = vadd.f32 %v987, %v1149
      %v1151 = vpop.f32.mrb[0].mxu0
      %v1152 = vadd.f32 %v989, %v1151
      %v1153 = vpop.f32.mrb[0].mxu0
      %v1154 = vadd.f32 %v991, %v1153
      %v1155 = vpop.f32.mrb[0].mxu0
      %v1156 = vadd.f32 %v993, %v1155
      %1157 = vmatprep.mubr.bf16.mxu0 %v535
      %1158 = vmatmul.mubr.bf16.gmra.mrb[0].mxu0 %v534
      %v1159 = vpop.f32.mrb[0].mxu0
      %v1160 = vadd.f32 %v997, %v1159
      %v1161 = vpop.f32.mrb[0].mxu0
      %v1162 = vadd.f32 %v999, %v1161
      %v1163 = vpop.f32.mrb[0].mxu0
      %v1164 = vadd.f32 %v1001, %v1163
      %v1165 = vpop.f32.mrb[0].mxu0
      %v1166 = vadd.f32 %v1003, %v1165
      %1167 = vmatprep.mubr.bf16.mxu0 %v539
      %1168 = vmatmul.mubr.bf16.gmra.mrb[0].mxu0 %v538
      %v1169 = vpop.f32.mrb[0].mxu0
      %v1170 = vadd.f32 %v1007, %v1169
      %v1171 = vpop.f32.mrb[0].mxu0
      %v1172 = vadd.f32 %v1009, %v1171
      %v1173 = vpop.f32.mrb[0].mxu0
      %v1174 = vadd.f32 %v1011, %v1173
      %v1175 = vpop.f32.mrb[0].mxu0
      %v1176 = vadd.f32 %v1013, %v1175
      %1177 = vmatprep.mubr.bf16.mxu0 %v543
      %1178 = vmatmul.mubr.bf16.gmra.mrb[0].mxu0 %v542
      %v1179 = vpop.f32.mrb[0].mxu0
      %v1180 = vadd.f32 %v1017, %v1179
      %v1181 = vpop.f32.mrb[0].mxu0
      %v1182 = vadd.f32 %v1019, %v1181
      %v1183 = vpop.f32.mrb[0].mxu0
      %v1184 = vadd.f32 %v1021, %v1183
      %v1185 = vpop.f32.mrb[0].mxu0
      %v1186 = vadd.f32 %v1023, %v1185
      %1187 = vmatprep.mubr.bf16.mxu0 %v547
      %1188 = vmatmul.mubr.bf16.gmra.mrb[0].mxu0 %v546
      %v1189 = vpop.f32.mrb[0].mxu0
      %v1190 = vadd.f32 %v1027, %v1189
      %v1191 = vpop.f32.mrb[0].mxu0
      %v1192 = vadd.f32 %v1029, %v1191
      %v1193 = vpop.f32.mrb[0].mxu0
      %v1194 = vadd.f32 %v1031, %v1193
      %v1195 = vpop.f32.mrb[0].mxu0
      %v1196 = vadd.f32 %v1033, %v1195
      %1197 = vmatprep.mubr.bf16.mxu0 %v551
      %1198 = vmatmul.mubr.bf16.gmra.mrb[0].mxu0 %v550
      %v1199 = vpop.f32.mrb[0].mxu0
      %v1200 = vadd.f32 %v1037, %v1199
      %v1201 = vpop.f32.mrb[0].mxu0
      %v1202 = vadd.f32 %v1039, %v1201
      %v1203 = vpop.f32.mrb[0].mxu0
      %v1204 = vadd.f32 %v1041, %v1203
      %v1205 = vpop.f32.mrb[0].mxu0
      %v1206 = vadd.f32 %v1043, %v1205
      %1207 = vmatprep.mubr.bf16.mxu0 %v555
      %1208 = vmatmul.mubr.bf16.gmra.mrb[0].mxu0 %v554
      %v1209 = vpop.f32.mrb[0].mxu0
      %v1210 = vadd.f32 %v1047, %v1209
      %v1211 = vpop.f32.mrb[0].mxu0
      %v1212 = vadd.f32 %v1049, %v1211
      %v1213 = vpop.f32.mrb[0].mxu0
      %v1214 = vadd.f32 %v1051, %v1213
      %v1215 = vpop.f32.mrb[0].mxu0
      %v1216 = vadd.f32 %v1053, %v1215
      %1217 = vmatprep.mubr.bf16.mxu0 %v559
      %1218 = vmatmul.mubr.bf16.gmra.mrb[0].mxu0 %v558
      %v1219 = vpop.f32.mrb[0].mxu0
      %v1220 = vadd.f32 %v1057, %v1219
      %v1221 = vpop.f32.mrb[0].mxu0
      %v1222 = vadd.f32 %v1059, %v1221
      %v1223 = vpop.f32.mrb[0].mxu0
      %v1224 = vadd.f32 %v1061, %v1223
      %v1225 = vpop.f32.mrb[0].mxu0
      %v1226 = vadd.f32 %v1063, %v1225
      %1227 = vmatprep.mubr.bf16.mxu0 %v563
      %1228 = vmatmul.mubr.bf16.gmra.mrb[0].mxu0 %v562
      %v1229 = vpop.f32.mrb[0].mxu0
      %v1230 = vadd.f32 %v1067, %v1229
      %v1231 = vpop.f32.mrb[0].mxu0
      %v1232 = vadd.f32 %v1069, %v1231
      %v1233 = vpop.f32.mrb[0].mxu0
      %v1234 = vadd.f32 %v1071, %v1233
      %v1235 = vpop.f32.mrb[0].mxu0
      %v1236 = vadd.f32 %v1073, %v1235
      %1237 = vmatprep.mubr.bf16.mxu0 %v567
      %1238 = vmatmul.mubr.bf16.gmra.mrb[0].mxu0 %v566
      %v1239 = vpop.f32.mrb[0].mxu0
      %v1240 = vadd.f32 %v1077, %v1239
      %v1241 = vpop.f32.mrb[0].mxu0
      %v1242 = vadd.f32 %v1079, %v1241
      %v1243 = vpop.f32.mrb[0].mxu0
      %v1244 = vadd.f32 %v1081, %v1243
      %v1245 = vpop.f32.mrb[0].mxu0
      %v1246 = vadd.f32 %v1083, %v1245
      %1247 = vmatprep.mubr.bf16.mxu0 %v571
      %1248 = vmatmul.mubr.bf16.gmra.mrb[0].mxu0 %v570
      %v1249 = vpop.f32.mrb[0].mxu0
      %v1250 = vadd.f32 %v1087, %v1249
      %v1251 = vpop.f32.mrb[0].mxu0
      %v1252 = vadd.f32 %v1089, %v1251
      %v1253 = vpop.f32.mrb[0].mxu0
      %v1254 = vadd.f32 %v1091, %v1253
      %v1255 = vpop.f32.mrb[0].mxu0
      %v1256 = vadd.f32 %v1093, %v1255
      %1257 = vmatprep.mubr.bf16.mxu0 %v575
      %1258 = vmatmul.mubr.bf16.gmra.mrb[0].mxu0 %v574
      %v1259 = vpop.f32.mrb[0].mxu0
      %v1260 = vadd.f32 %v1097, %v1259
      %v1261 = vpop.f32.mrb[0].mxu0
      %v1262 = vadd.f32 %v1099, %v1261
      %v1263 = vpop.f32.mrb[0].mxu0
      %v1264 = vadd.f32 %v1101, %v1263
      %v1265 = vpop.f32.mrb[0].mxu0
      %v1266 = vadd.f32 %v1103, %v1265
      %1267 = vmatprep.mubr.bf16.mxu0 %v579
      %1268 = vmatmul.mubr.bf16.gmra.mrb[0].mxu0 %v578
      %v1269 = vpop.f32.mrb[0].mxu0
      %v1270 = vadd.f32 %v1107, %v1269
      %v1271 = vpop.f32.mrb[0].mxu0
      %v1272 = vadd.f32 %v1109, %v1271
      %v1273 = vpop.f32.mrb[0].mxu0
      %v1274 = vadd.f32 %v1111, %v1273
      %v1275 = vpop.f32.mrb[0].mxu0
      %v1276 = vadd.f32 %v1113, %v1275
      %1277 = vdwg.mxu0
      %v1278 = vmul.f32 %v1150, %v1150
      %v1279 = vmul.f32 %v1154, %v1154
      %v1280 = vmul.f32 %v1160, %v1160
      %v1281 = vmul.f32 %v1164, %v1164
      %v1282 = vmul.f32 %v1170, %v1170
      %v1283 = vmul.f32 %v1174, %v1174
      %v1284 = vmul.f32 %v1180, %v1180
      %v1285 = vmul.f32 %v1184, %v1184
      %v1286 = vmul.f32 %v1190, %v1190
      %v1287 = vmul.f32 %v1194, %v1194
      %v1288 = vmul.f32 %v1200, %v1200
      %v1289 = vmul.f32 %v1204, %v1204
      %v1290 = vmul.f32 %v1210, %v1210
      %v1291 = vmul.f32 %v1214, %v1214
      %v1292 = vmul.f32 %v1220, %v1220
      %v1293 = vmul.f32 %v1224, %v1224
      %v1294 = vmul.f32 %v1230, %v1230
      %v1295 = vmul.f32 %v1234, %v1234
      %v1296 = vmul.f32 %v1240, %v1240
      %v1297 = vmul.f32 %v1244, %v1244
      %v1298 = vmul.f32 %v1250, %v1250
      %v1299 = vmul.f32 %v1254, %v1254
      %v1300 = vmul.f32 %v1260, %v1260
      %v1301 = vmul.f32 %v1264, %v1264
      %v1302 = vmul.f32 %v1270, %v1270
      %v1303 = vmul.f32 %v1274, %v1274
      %v1304 = vmul.f32 %v1152, %v1152
      %v1305 = vmul.f32 %v1156, %v1156
      %v1306 = vmul.f32 %v1162, %v1162
      %v1307 = vmul.f32 %v1166, %v1166
      %v1308 = vmul.f32 %v1172, %v1172
      %v1309 = vmul.f32 %v1176, %v1176
      %v1310 = vmul.f32 %v1182, %v1182
      %v1311 = vmul.f32 %v1186, %v1186
      %v1312 = vmul.f32 %v1192, %v1192
      %v1313 = vmul.f32 %v1196, %v1196
      %v1314 = vmul.f32 %v1202, %v1202
      %v1315 = vmul.f32 %v1206, %v1206
      %v1316 = vmul.f32 %v1212, %v1212
      %v1317 = vmul.f32 %v1216, %v1216
      %v1318 = vmul.f32 %v1222, %v1222
      %v1319 = vmul.f32 %v1226, %v1226
      %v1320 = vmul.f32 %v1232, %v1232
      %v1321 = vmul.f32 %v1236, %v1236
      %v1322 = vmul.f32 %v1242, %v1242
      %v1323 = vmul.f32 %v1246, %v1246
      %v1324 = vmul.f32 %v1252, %v1252
      %v1325 = vmul.f32 %v1256, %v1256
      %v1326 = vmul.f32 %v1262, %v1262
      %v1327 = vmul.f32 %v1266, %v1266
      %v1328 = vmul.f32 %v1272, %v1272
      %v1329 = vmul.f32 %v1276, %v1276
      %v1330 = vadd.f32 %v1278, %v1304
      %v1331 = vadd.f32 %v1279, %v1305
      %v1332 = vadd.f32 %v1280, %v1306
      %v1333 = vadd.f32 %v1281, %v1307
      %v1334 = vadd.f32 %v1282, %v1308
      %v1335 = vadd.f32 %v1283, %v1309
      %v1336 = vadd.f32 %v1284, %v1310
      %v1337 = vadd.f32 %v1285, %v1311
      %v1338 = vadd.f32 %v1286, %v1312
      %v1339 = vadd.f32 %v1287, %v1313
      %v1340 = vadd.f32 %v1288, %v1314
      %v1341 = vadd.f32 %v1289, %v1315
      %v1342 = vadd.f32 %v1290, %v1316
      %v1343 = vadd.f32 %v1291, %v1317
      %v1344 = vadd.f32 %v1292, %v1318
      %v1345 = vadd.f32 %v1293, %v1319
      %v1346 = vadd.f32 %v1294, %v1320
      %v1347 = vadd.f32 %v1295, %v1321
      %v1348 = vadd.f32 %v1296, %v1322
      %v1349 = vadd.f32 %v1297, %v1323
      %v1350 = vadd.f32 %v1298, %v1324
      %v1351 = vadd.f32 %v1299, %v1325
      %v1352 = vadd.f32 %v1300, %v1326
      %v1353 = vadd.f32 %v1301, %v1327
      %v1354 = vadd.f32 %v1302, %v1328
      %v1355 = vadd.f32 %v1303, %v1329
      %v1356 = vrsqrt.pop %v1330
      %v1357 = vmul.f32 %v1330, %v1356
      %vm1358 = vcmp.eq.f32.partialorder %v1330, inf
      %v1359 = vsel %vm1358, %v1330, %v1357
      %vm1360 = vcmp.eq.f32.partialorder %v1330, 0.0
      %v1361 = vand.u32 %v1330, 2147483648
      %v1362 = vsel %vm1360, %v1361, %v1359
      %v1363 = vrsqrt.pop %v1331
      %v1364 = vmul.f32 %v1331, %v1363
      %vm1365 = vcmp.eq.f32.partialorder %v1331, inf
      %v1366 = vsel %vm1365, %v1331, %v1364
      %vm1367 = vcmp.eq.f32.partialorder %v1331, 0.0
      %v1368 = vand.u32 %v1331, 2147483648
      %v1369 = vsel %vm1367, %v1368, %v1366
      %v1370 = vrsqrt.pop %v1332
      %v1371 = vmul.f32 %v1332, %v1370
      %vm1372 = vcmp.eq.f32.partialorder %v1332, inf
      %v1373 = vsel %vm1372, %v1332, %v1371
      %vm1374 = vcmp.eq.f32.partialorder %v1332, 0.0
      %v1375 = vand.u32 %v1332, 2147483648
      %v1376 = vsel %vm1374, %v1375, %v1373
      %v1377 = vrsqrt.pop %v1333
      %v1378 = vmul.f32 %v1333, %v1377
      %vm1379 = vcmp.eq.f32.partialorder %v1333, inf
      %v1380 = vsel %vm1379, %v1333, %v1378
      %vm1381 = vcmp.eq.f32.partialorder %v1333, 0.0
      %v1382 = vand.u32 %v1333, 2147483648
      %v1383 = vsel %vm1381, %v1382, %v1380
      %v1384 = vrsqrt.pop %v1334
      %v1385 = vmul.f32 %v1334, %v1384
      %vm1386 = vcmp.eq.f32.partialorder %v1334, inf
      %v1387 = vsel %vm1386, %v1334, %v1385
      %vm1388 = vcmp.eq.f32.partialorder %v1334, 0.0
      %v1389 = vand.u32 %v1334, 2147483648
      %v1390 = vsel %vm1388, %v1389, %v1387
      %v1391 = vrsqrt.pop %v1335
      %v1392 = vmul.f32 %v1335, %v1391
      %vm1393 = vcmp.eq.f32.partialorder %v1335, inf
      %v1394 = vsel %vm1393, %v1335, %v1392
      %vm1395 = vcmp.eq.f32.partialorder %v1335, 0.0
      %v1396 = vand.u32 %v1335, 2147483648
      %v1397 = vsel %vm1395, %v1396, %v1394
      %v1398 = vrsqrt.pop %v1336
      %v1399 = vmul.f32 %v1336, %v1398
      %vm1400 = vcmp.eq.f32.partialorder %v1336, inf
      %v1401 = vsel %vm1400, %v1336, %v1399
      %vm1402 = vcmp.eq.f32.partialorder %v1336, 0.0
      %v1403 = vand.u32 %v1336, 2147483648
      %v1404 = vsel %vm1402, %v1403, %v1401
      %v1405 = vrsqrt.pop %v1337
      %v1406 = vmul.f32 %v1337, %v1405
      %vm1407 = vcmp.eq.f32.partialorder %v1337, inf
      %v1408 = vsel %vm1407, %v1337, %v1406
      %vm1409 = vcmp.eq.f32.partialorder %v1337, 0.0
      %v1410 = vand.u32 %v1337, 2147483648
      %v1411 = vsel %vm1409, %v1410, %v1408
      %v1412 = vrsqrt.pop %v1338
      %v1413 = vmul.f32 %v1338, %v1412
      %vm1414 = vcmp.eq.f32.partialorder %v1338, inf
      %v1415 = vsel %vm1414, %v1338, %v1413
      %vm1416 = vcmp.eq.f32.partialorder %v1338, 0.0
      %v1417 = vand.u32 %v1338, 2147483648
      %v1418 = vsel %vm1416, %v1417, %v1415
      %v1419 = vrsqrt.pop %v1339
      %v1420 = vmul.f32 %v1339, %v1419
      %vm1421 = vcmp.eq.f32.partialorder %v1339, inf
      %v1422 = vsel %vm1421, %v1339, %v1420
      %vm1423 = vcmp.eq.f32.partialorder %v1339, 0.0
      %v1424 = vand.u32 %v1339, 2147483648
      %v1425 = vsel %vm1423, %v1424, %v1422
      %v1426 = vrsqrt.pop %v1340
      %v1427 = vmul.f32 %v1340, %v1426
      %vm1428 = vcmp.eq.f32.partialorder %v1340, inf
      %v1429 = vsel %vm1428, %v1340, %v1427
      %vm1430 = vcmp.eq.f32.partialorder %v1340, 0.0
      %v1431 = vand.u32 %v1340, 2147483648
      %v1432 = vsel %vm1430, %v1431, %v1429
      %v1433 = vrsqrt.pop %v1341
      %v1434 = vmul.f32 %v1341, %v1433
      %vm1435 = vcmp.eq.f32.partialorder %v1341, inf
      %v1436 = vsel %vm1435, %v1341, %v1434
      %vm1437 = vcmp.eq.f32.partialorder %v1341, 0.0
      %v1438 = vand.u32 %v1341, 2147483648
      %v1439 = vsel %vm1437, %v1438, %v1436
      %v1440 = vrsqrt.pop %v1342
      %v1441 = vmul.f32 %v1342, %v1440
      %vm1442 = vcmp.eq.f32.partialorder %v1342, inf
      %v1443 = vsel %vm1442, %v1342, %v1441
      %vm1444 = vcmp.eq.f32.partialorder %v1342, 0.0
      %v1445 = vand.u32 %v1342, 2147483648
      %v1446 = vsel %vm1444, %v1445, %v1443
      %v1447 = vrsqrt.pop %v1343
      %v1448 = vmul.f32 %v1343, %v1447
      %vm1449 = vcmp.eq.f32.partialorder %v1343, inf
      %v1450 = vsel %vm1449, %v1343, %v1448
      %vm1451 = vcmp.eq.f32.partialorder %v1343, 0.0
      %v1452 = vand.u32 %v1343, 2147483648
      %v1453 = vsel %vm1451, %v1452, %v1450
      %v1454 = vrsqrt.pop %v1344
      %v1455 = vmul.f32 %v1344, %v1454
      %vm1456 = vcmp.eq.f32.partialorder %v1344, inf
      %v1457 = vsel %vm1456, %v1344, %v1455
      %vm1458 = vcmp.eq.f32.partialorder %v1344, 0.0
      %v1459 = vand.u32 %v1344, 2147483648
      %v1460 = vsel %vm1458, %v1459, %v1457
      %v1461 = vrsqrt.pop %v1345
      %v1462 = vmul.f32 %v1345, %v1461
      %vm1463 = vcmp.eq.f32.partialorder %v1345, inf
      %v1464 = vsel %vm1463, %v1345, %v1462
      %vm1465 = vcmp.eq.f32.partialorder %v1345, 0.0
      %v1466 = vand.u32 %v1345, 2147483648
      %v1467 = vsel %vm1465, %v1466, %v1464
      %v1468 = vrsqrt.pop %v1346
      %v1469 = vmul.f32 %v1346, %v1468
      %vm1470 = vcmp.eq.f32.partialorder %v1346, inf
      %v1471 = vsel %vm1470, %v1346, %v1469
      %vm1472 = vcmp.eq.f32.partialorder %v1346, 0.0
      %v1473 = vand.u32 %v1346, 2147483648
      %v1474 = vsel %vm1472, %v1473, %v1471
      %v1475 = vrsqrt.pop %v1347
      %v1476 = vmul.f32 %v1347, %v1475
      %vm1477 = vcmp.eq.f32.partialorder %v1347, inf
      %v1478 = vsel %vm1477, %v1347, %v1476
      %vm1479 = vcmp.eq.f32.partialorder %v1347, 0.0
      %v1480 = vand.u32 %v1347, 2147483648
      %v1481 = vsel %vm1479, %v1480, %v1478
      %v1482 = vrsqrt.pop %v1348
      %v1483 = vmul.f32 %v1348, %v1482
      %vm1484 = vcmp.eq.f32.partialorder %v1348, inf
      %v1485 = vsel %vm1484, %v1348, %v1483
      %vm1486 = vcmp.eq.f32.partialorder %v1348, 0.0
      %v1487 = vand.u32 %v1348, 2147483648
      %v1488 = vsel %vm1486, %v1487, %v1485
      %v1489 = vrsqrt.pop %v1349
      %v1490 = vmul.f32 %v1349, %v1489
      %vm1491 = vcmp.eq.f32.partialorder %v1349, inf
      %v1492 = vsel %vm1491, %v1349, %v1490
      %vm1493 = vcmp.eq.f32.partialorder %v1349, 0.0
      %v1494 = vand.u32 %v1349, 2147483648
      %v1495 = vsel %vm1493, %v1494, %v1492
      %v1496 = vrsqrt.pop %v1350
      %v1497 = vmul.f32 %v1350, %v1496
      %vm1498 = vcmp.eq.f32.partialorder %v1350, inf
      %v1499 = vsel %vm1498, %v1350, %v1497
      %vm1500 = vcmp.eq.f32.partialorder %v1350, 0.0
      %v1501 = vand.u32 %v1350, 2147483648
      %v1502 = vsel %vm1500, %v1501, %v1499
      %v1503 = vrsqrt.pop %v1351
      %v1504 = vmul.f32 %v1351, %v1503
      %vm1505 = vcmp.eq.f32.partialorder %v1351, inf
      %v1506 = vsel %vm1505, %v1351, %v1504
      %vm1507 = vcmp.eq.f32.partialorder %v1351, 0.0
      %v1508 = vand.u32 %v1351, 2147483648
      %v1509 = vsel %vm1507, %v1508, %v1506
      %v1510 = vrsqrt.pop %v1352
      %v1511 = vmul.f32 %v1352, %v1510
      %vm1512 = vcmp.eq.f32.partialorder %v1352, inf
      %v1513 = vsel %vm1512, %v1352, %v1511
      %vm1514 = vcmp.eq.f32.partialorder %v1352, 0.0
      %v1515 = vand.u32 %v1352, 2147483648
      %v1516 = vsel %vm1514, %v1515, %v1513
      %v1517 = vrsqrt.pop %v1353
      %v1518 = vmul.f32 %v1353, %v1517
      %vm1519 = vcmp.eq.f32.partialorder %v1353, inf
      %v1520 = vsel %vm1519, %v1353, %v1518
      %vm1521 = vcmp.eq.f32.partialorder %v1353, 0.0
      %v1522 = vand.u32 %v1353, 2147483648
      %v1523 = vsel %vm1521, %v1522, %v1520
      %v1524 = vrsqrt.pop %v1354
      %v1525 = vmul.f32 %v1354, %v1524
      %vm1526 = vcmp.eq.f32.partialorder %v1354, inf
      %v1527 = vsel %vm1526, %v1354, %v1525
      %vm1528 = vcmp.eq.f32.partialorder %v1354, 0.0
      %v1529 = vand.u32 %v1354, 2147483648
      %v1530 = vsel %vm1528, %v1529, %v1527
      %v1531 = vrsqrt.pop %v1355
      %v1532 = vmul.f32 %v1355, %v1531
      %vm1533 = vcmp.eq.f32.partialorder %v1355, inf
      %v1534 = vsel %vm1533, %v1355, %v1532
      %vm1535 = vcmp.eq.f32.partialorder %v1355, 0.0
      %v1536 = vand.u32 %v1355, 2147483648
      %v1537 = vsel %vm1535, %v1536, %v1534
      %v1538 = vmin.f32 %v1362, 10000.0
      %v1539 = vmin.f32 %v1369, 10000.0
      %v1540 = vmin.f32 %v1376, 10000.0
      %v1541 = vmin.f32 %v1383, 10000.0
      %v1542 = vmin.f32 %v1390, 10000.0
      %v1543 = vmin.f32 %v1397, 10000.0
      %v1544 = vmin.f32 %v1404, 10000.0
      %v1545 = vmin.f32 %v1411, 10000.0
      %v1546 = vmin.f32 %v1418, 10000.0
      %v1547 = vmin.f32 %v1425, 10000.0
      %v1548 = vmin.f32 %v1432, 10000.0
      %v1549 = vmin.f32 %v1439, 10000.0
      %v1550 = vmin.f32 %v1446, 10000.0
      %v1551 = vmin.f32 %v1453, 10000.0
      %v1552 = vmin.f32 %v1460, 10000.0
      %v1553 = vmin.f32 %v1467, 10000.0
      %v1554 = vmin.f32 %v1474, 10000.0
      %v1555 = vmin.f32 %v1481, 10000.0
      %v1556 = vmin.f32 %v1488, 10000.0
      %v1557 = vmin.f32 %v1495, 10000.0
      %v1558 = vmin.f32 %v1502, 10000.0
      %v1559 = vmin.f32 %v1509, 10000.0
      %v1560 = vmin.f32 %v1516, 10000.0
      %v1561 = vmin.f32 %v1523, 10000.0
      %v1562 = vmin.f32 %v1530, 10000.0
      %v1563 = vmin.f32 %v1537, 10000.0
      %v1564 = vmul.f32 %v1538, 0.001
      %v1565 = vmul.f32 %v1539, 0.001
      %v1566 = vmul.f32 %v1540, 0.001
      %v1567 = vmul.f32 %v1541, 0.001
      %v1568 = vmul.f32 %v1542, 0.001
      %v1569 = vmul.f32 %v1543, 0.001
      %v1570 = vmul.f32 %v1544, 0.001
      %v1571 = vmul.f32 %v1545, 0.001
      %v1572 = vmul.f32 %v1546, 0.001
      %v1573 = vmul.f32 %v1547, 0.001
      %v1574 = vmul.f32 %v1548, 0.001
      %v1575 = vmul.f32 %v1549, 0.001
      %v1576 = vmul.f32 %v1550, 0.001
      %v1577 = vmul.f32 %v1551, 0.001
      %v1578 = vmul.f32 %v1552, 0.001
      %v1579 = vmul.f32 %v1553, 0.001
      %v1580 = vmul.f32 %v1554, 0.001
      %v1581 = vmul.f32 %v1555, 0.001
      %v1582 = vmul.f32 %v1556, 0.001
      %v1583 = vmul.f32 %v1557, 0.001
      %v1584 = vmul.f32 %v1558, 0.001
      %v1585 = vmul.f32 %v1559, 0.001
      %v1586 = vmul.f32 %v1560, 0.001
      %v1587 = vmul.f32 %v1561, 0.001
      %v1588 = vmul.f32 %v1562, 0.001
      %v1589 = vmul.f32 %v1563, 0.001
      %v1590 = vadd.f32 %v1564, %v1565
      %v1591 = vadd.f32 %v1590, %v1566
      %v1592 = vadd.f32 %v1591, %v1567
      %v1593 = vadd.f32 %v1592, %v1568
      %v1594 = vadd.f32 %v1593, %v1569
      %v1595 = vadd.f32 %v1594, %v1570
      %v1596 = vadd.f32 %v1595, %v1571
      %v1597 = vadd.f32 %v1596, %v1572
      %v1598 = vadd.f32 %v1597, %v1573
      %v1599 = vadd.f32 %v1598, %v1574
      %v1600 = vadd.f32 %v1599, %v1575
      %v1601 = vadd.f32 %v1600, %v1576
      %v1602 = vadd.f32 %v1601, %v1577
      %v1603 = vadd.f32 %v1602, %v1578
      %v1604 = vadd.f32 %v1603, %v1579
      %v1605 = vadd.f32 %v1604, %v1580
      %v1606 = vadd.f32 %v1605, %v1581
      %v1607 = vadd.f32 %v1606, %v1582
      %v1608 = vadd.f32 %v1607, %v1583
      %v1609 = vadd.f32 %v1608, %v1584
      %v1610 = vadd.f32 %v1609, %v1585
      %v1611 = vadd.f32 %v1610, %v1586
      %v1612 = vadd.f32 %v1611, %v1587
      %v1613 = vadd.f32 %v1612, %v1588
      %v1614 = vadd.f32 %v1613, %v1589
      %1615 = vadd.xlane.f32.xlu0 %v1614
      %v1616 = vpop.xlane.xlu0 %1615
      %v1617 = vrot.slane %v1616, 4
      %v1618 = vadd.f32 %v1616, %v1617
      %v1619 = vrot.slane %v1618, 2
      %v1620 = vadd.f32 %v1618, %v1619
      %v1621 = vrot.slane %v1620, 1
      %v1622 = vadd.f32 %v1620, %v1621
      %s1623 = vtos %v1622
      %v1624 = vld [vmem:[%s251] sm:$0xff]
      %v1625 = vld [vmem:[%s251 + $0x8] sm:$0xff]
      %v1626 = vld [vmem:[%s251 + $0x10] sm:$0xff]
      %v1627 = vld [vmem:[%s251 + $0x18] sm:$0xff]
      %v1628 = vld [vmem:[%s251 + $0x20] sm:$0xff]
      %v1629 = vld [vmem:[%s251 + $0x28] sm:$0xff]
      %v1630 = vld [vmem:[%s251 + $0x30] sm:$0xff]
      %v1631 = vld [vmem:[%s251 + $0x38] sm:$0xff]
      %v1632 = vld [vmem:[%s251 + $0x40] sm:$0xff]
      %v1633 = vld [vmem:[%s251 + $0x48] sm:$0xff]
      %v1634 = vld [vmem:[%s251 + $0x50] sm:$0xff]
      %v1635 = vld [vmem:[%s251 + $0x58] sm:$0xff]
      %v1636 = vld [vmem:[%s251 + $0x60] sm:$0xff]
      %v1637 = vld [vmem:[%s251 + $0x68] sm:$0xff]
      %v1638 = vld [vmem:[%s251 + $0x70] sm:$0xff]
      %v1639 = vld [vmem:[%s251 + $0x78] sm:$0xff]
      %v1640 = vld [vmem:[%s251 + $0x80] sm:$0xff]
      %v1641 = vld [vmem:[%s251 + $0x88] sm:$0xff]
      %v1642 = vld [vmem:[%s251 + $0x90] sm:$0xff]
      %v1643 = vld [vmem:[%s251 + $0x98] sm:$0xff]
      %v1644 = vld [vmem:[%s251 + $0xa0] sm:$0xff]
      %v1645 = vld [vmem:[%s251 + $0xa8] sm:$0xff]
      %v1646 = vld [vmem:[%s251 + $0xb0] sm:$0xff]
      %v1647 = vld [vmem:[%s251 + $0xb8] sm:$0xff]
      %v1648 = vld [vmem:[%s251 + $0xc0] sm:$0xff]
      %v1649 = vld [vmem:[%s251 + $0xc8] sm:$0xff]
      %v1650 = vld [vmem:[%s251 + $0xd0] sm:$0xff]
      %v1651 = vld [vmem:[%s251 + $0xd8] sm:$0xff]
      %v1652 = vld [vmem:[%s251 + $0xe0] sm:$0xff]
      %v1653 = vld [vmem:[%s251 + $0xe8] sm:$0xff]
      %v1654 = vld [vmem:[%s251 + $0xf0] sm:$0xff]
      %v1655 = vld [vmem:[%s251 + $0xf8] sm:$0xff]
      %v1656 = vld [vmem:[%s251 + $0x100] sm:$0xff]
      %v1657 = vld [vmem:[%s251 + $0x108] sm:$0xff]
      %v1658 = vld [vmem:[%s251 + $0x110] sm:$0xff]
      %v1659 = vld [vmem:[%s251 + $0x118] sm:$0xff]
      %v1660 = vld [vmem:[%s251 + $0x120] sm:$0xff]
      %v1661 = vld [vmem:[%s251 + $0x128] sm:$0xff]
      %v1662 = vld [vmem:[%s251 + $0x130] sm:$0xff]
      %v1663 = vld [vmem:[%s251 + $0x138] sm:$0xff]
      %v1664 = vld [vmem:[%s251 + $0x140] sm:$0xff]
      %v1665 = vld [vmem:[%s251 + $0x148] sm:$0xff]
      %v1666 = vld [vmem:[%s251 + $0x150] sm:$0xff]
      %v1667 = vld [vmem:[%s251 + $0x158] sm:$0xff]
      %v1668 = vld [vmem:[%s251 + $0x160] sm:$0xff]
      %v1669 = vld [vmem:[%s251 + $0x168] sm:$0xff]
      %v1670 = vld [vmem:[%s251 + $0x170] sm:$0xff]
      %v1671 = vld [vmem:[%s251 + $0x178] sm:$0xff]
      %v1672 = vld [vmem:[%s251 + $0x180] sm:$0xff]
      %v1673 = vld [vmem:[%s251 + $0x188] sm:$0xff]
      %v1674 = vld [vmem:[%s251 + $0x190] sm:$0xff]
      %v1675 = vld [vmem:[%s251 + $0x198] sm:$0xff]
      %v1728 = vunpack.c.l.b16 %v1624
      %v1729 = vunpack.c.h.b16 %v1624
      %v1730 = vunpack.c.l.b16 %v1625
      %v1731 = vunpack.c.h.b16 %v1625
      %v1732 = vunpack.c.l.b16 %v1626
      %v1733 = vunpack.c.h.b16 %v1626
      %v1734 = vunpack.c.l.b16 %v1627
      %v1735 = vunpack.c.h.b16 %v1627
      %v1736 = vunpack.c.l.b16 %v1628
      %v1737 = vunpack.c.h.b16 %v1628
      %v1738 = vunpack.c.l.b16 %v1629
      %v1739 = vunpack.c.h.b16 %v1629
      %v1740 = vunpack.c.l.b16 %v1630
      %v1741 = vunpack.c.h.b16 %v1630
      %v1742 = vunpack.c.l.b16 %v1631
      %v1743 = vunpack.c.h.b16 %v1631
      %v1744 = vunpack.c.l.b16 %v1632
      %v1745 = vunpack.c.h.b16 %v1632
      %v1746 = vunpack.c.l.b16 %v1633
      %v1747 = vunpack.c.h.b16 %v1633
      %v1748 = vunpack.c.l.b16 %v1634
      %v1749 = vunpack.c.h.b16 %v1634
      %v1750 = vunpack.c.l.b16 %v1635
      %v1751 = vunpack.c.h.b16 %v1635
      %v1752 = vunpack.c.l.b16 %v1636
      %v1753 = vunpack.c.h.b16 %v1636
      %v1754 = vunpack.c.l.b16 %v1637
      %v1755 = vunpack.c.h.b16 %v1637
      %v1756 = vunpack.c.l.b16 %v1638
      %v1757 = vunpack.c.h.b16 %v1638
      %v1758 = vunpack.c.l.b16 %v1639
      %v1759 = vunpack.c.h.b16 %v1639
      %v1760 = vunpack.c.l.b16 %v1640
      %v1761 = vunpack.c.h.b16 %v1640
      %v1762 = vunpack.c.l.b16 %v1641
      %v1763 = vunpack.c.h.b16 %v1641
      %v1764 = vunpack.c.l.b16 %v1642
      %v1765 = vunpack.c.h.b16 %v1642
      %v1766 = vunpack.c.l.b16 %v1643
      %v1767 = vunpack.c.h.b16 %v1643
      %v1768 = vunpack.c.l.b16 %v1644
      %v1769 = vunpack.c.h.b16 %v1644
      %v1770 = vunpack.c.l.b16 %v1645
      %v1771 = vunpack.c.h.b16 %v1645
      %v1772 = vunpack.c.l.b16 %v1646
      %v1773 = vunpack.c.h.b16 %v1646
      %v1774 = vunpack.c.l.b16 %v1647
      %v1775 = vunpack.c.h.b16 %v1647
      %v1776 = vunpack.c.l.b16 %v1648
      %v1777 = vunpack.c.h.b16 %v1648
      %v1778 = vunpack.c.l.b16 %v1649
      %v1779 = vunpack.c.h.b16 %v1649
      %v1780 = vunpack.c.l.b16 %v1650
      %v1781 = vunpack.c.h.b16 %v1650
      %v1782 = vunpack.c.l.b16 %v1651
      %v1783 = vunpack.c.h.b16 %v1651
      %v1784 = vunpack.c.l.b16 %v1652
      %v1785 = vunpack.c.h.b16 %v1652
      %v1786 = vunpack.c.l.b16 %v1653
      %v1787 = vunpack.c.h.b16 %v1653
      %v1788 = vunpack.c.l.b16 %v1654
      %v1789 = vunpack.c.h.b16 %v1654
      %v1790 = vunpack.c.l.b16 %v1655
      %v1791 = vunpack.c.h.b16 %v1655
      %v1792 = vunpack.c.l.b16 %v1656
      %v1793 = vunpack.c.h.b16 %v1656
      %v1794 = vunpack.c.l.b16 %v1657
      %v1795 = vunpack.c.h.b16 %v1657
      %v1796 = vunpack.c.l.b16 %v1658
      %v1797 = vunpack.c.h.b16 %v1658
      %v1798 = vunpack.c.l.b16 %v1659
      %v1799 = vunpack.c.h.b16 %v1659
      %v1800 = vunpack.c.l.b16 %v1660
      %v1801 = vunpack.c.h.b16 %v1660
      %v1802 = vunpack.c.l.b16 %v1661
      %v1803 = vunpack.c.h.b16 %v1661
      %v1804 = vunpack.c.l.b16 %v1662
      %v1805 = vunpack.c.h.b16 %v1662
      %v1806 = vunpack.c.l.b16 %v1663
      %v1807 = vunpack.c.h.b16 %v1663
      %v1808 = vunpack.c.l.b16 %v1664
      %v1809 = vunpack.c.h.b16 %v1664
      %v1810 = vunpack.c.l.b16 %v1665
      %v1811 = vunpack.c.h.b16 %v1665
      %v1812 = vunpack.c.l.b16 %v1666
      %v1813 = vunpack.c.h.b16 %v1666
      %v1814 = vunpack.c.l.b16 %v1667
      %v1815 = vunpack.c.h.b16 %v1667
      %v1816 = vunpack.c.l.b16 %v1668
      %v1817 = vunpack.c.h.b16 %v1668
      %v1818 = vunpack.c.l.b16 %v1669
      %v1819 = vunpack.c.h.b16 %v1669
      %v1820 = vunpack.c.l.b16 %v1670
      %v1821 = vunpack.c.h.b16 %v1670
      %v1822 = vunpack.c.l.b16 %v1671
      %v1823 = vunpack.c.h.b16 %v1671
      %v1824 = vunpack.c.l.b16 %v1672
      %v1825 = vunpack.c.h.b16 %v1672
      %v1826 = vunpack.c.l.b16 %v1673
      %v1827 = vunpack.c.h.b16 %v1673
      %v1828 = vunpack.c.l.b16 %v1674
      %v1829 = vunpack.c.h.b16 %v1674
      %v1830 = vunpack.c.l.b16 %v1675
      %v1831 = vunpack.c.h.b16 %v1675
      %v1832 = vpack.c.b16 %v1732, %v1728
      %v1833 = vpack.c.b16 %v1733, %v1729
      %v1834 = vpack.c.b16 %v1734, %v1730
      %v1835 = vpack.c.b16 %v1735, %v1731
      %v1836 = vpack.c.b16 %v1740, %v1736
      %v1837 = vpack.c.b16 %v1741, %v1737
      %v1838 = vpack.c.b16 %v1742, %v1738
      %v1839 = vpack.c.b16 %v1743, %v1739
      %v1840 = vpack.c.b16 %v1748, %v1744
      %v1841 = vpack.c.b16 %v1749, %v1745
      %v1842 = vpack.c.b16 %v1750, %v1746
      %v1843 = vpack.c.b16 %v1751, %v1747
      %v1844 = vpack.c.b16 %v1756, %v1752
      %v1845 = vpack.c.b16 %v1757, %v1753
      %v1846 = vpack.c.b16 %v1758, %v1754
      %v1847 = vpack.c.b16 %v1759, %v1755
      %v1848 = vpack.c.b16 %v1764, %v1760
      %v1849 = vpack.c.b16 %v1765, %v1761
      %v1850 = vpack.c.b16 %v1766, %v1762
      %v1851 = vpack.c.b16 %v1767, %v1763
      %v1852 = vpack.c.b16 %v1772, %v1768
      %v1853 = vpack.c.b16 %v1773, %v1769
      %v1854 = vpack.c.b16 %v1774, %v1770
      %v1855 = vpack.c.b16 %v1775, %v1771
      %v1856 = vpack.c.b16 %v1780, %v1776
      %v1857 = vpack.c.b16 %v1781, %v1777
      %v1858 = vpack.c.b16 %v1782, %v1778
      %v1859 = vpack.c.b16 %v1783, %v1779
      %v1860 = vpack.c.b16 %v1788, %v1784
      %v1861 = vpack.c.b16 %v1789, %v1785
      %v1862 = vpack.c.b16 %v1790, %v1786
      %v1863 = vpack.c.b16 %v1791, %v1787
      %v1864 = vpack.c.b16 %v1796, %v1792
      %v1865 = vpack.c.b16 %v1797, %v1793
      %v1866 = vpack.c.b16 %v1798, %v1794
      %v1867 = vpack.c.b16 %v1799, %v1795
      %v1868 = vpack.c.b16 %v1804, %v1800
      %v1869 = vpack.c.b16 %v1805, %v1801
      %v1870 = vpack.c.b16 %v1806, %v1802
      %v1871 = vpack.c.b16 %v1807, %v1803
      %v1872 = vpack.c.b16 %v1812, %v1808
      %v1873 = vpack.c.b16 %v1813, %v1809
      %v1874 = vpack.c.b16 %v1814, %v1810
      %v1875 = vpack.c.b16 %v1815, %v1811
      %v1876 = vpack.c.b16 %v1820, %v1816
      %v1877 = vpack.c.b16 %v1821, %v1817
      %v1878 = vpack.c.b16 %v1822, %v1818
      %v1879 = vpack.c.b16 %v1823, %v1819
      %v1880 = vpack.c.b16 %v1828, %v1824
      %v1881 = vpack.c.b16 %v1829, %v1825
      %v1882 = vpack.c.b16 %v1830, %v1826
      %v1883 = vpack.c.b16 %v1831, %v1827
      %1936 = vmatprep.subr.bf16.mxu0 %v825
      %1937 = vmatpush1.bf16.msra.mxu0 %v824
      %1938 = vmatprep.subr.bf16.mxu0 %v827
      %1939 = vmatpush1.bf16.msra.mxu0 %v826
      %1940 = vmatprep.subr.bf16.mxu0 %v829
      %1941 = vmatpush1.bf16.msra.mxu0 %v828
      %1942 = vmatprep.subr.bf16.mxu0 %v831
      %1943 = vmatpush1.bf16.msra.mxu0 %v830
      %1944 = vmatprep.subr.bf16.mxu0 %v833
      %1945 = vmatpush1.bf16.msra.mxu0 %v832
      %1946 = vmatprep.subr.bf16.mxu0 %v835
      %1947 = vmatpush1.bf16.msra.mxu0 %v834
      %1948 = vmatprep.subr.bf16.mxu0 %v837
      %1949 = vmatpush1.bf16.msra.mxu0 %v836
      %1950 = vmatprep.subr.bf16.mxu0 %v839
      %1951 = vmatpush1.bf16.msra.mxu0 %v838
      %1952 = vmatprep.subr.bf16.mxu0 %v841
      %1953 = vmatpush1.bf16.msra.mxu0 %v840
      %1954 = vmatprep.subr.bf16.mxu0 %v843
      %1955 = vmatpush1.bf16.msra.mxu0 %v842
      %1956 = vmatprep.subr.bf16.mxu0 %v845
      %1957 = vmatpush1.bf16.msra.mxu0 %v844
      %1958 = vmatprep.subr.bf16.mxu0 %v847
      %1959 = vmatpush1.bf16.msra.mxu0 %v846
      %1960 = vmatprep.subr.bf16.mxu0 %v849
      %1961 = vmatpush1.bf16.msra.mxu0 %v848
      %1962 = vmatprep.subr.bf16.mxu0 %v851
      %1963 = vmatpush1.bf16.msra.mxu0 %v850
      %1964 = vmatprep.subr.bf16.mxu0 %v853
      %1965 = vmatpush1.bf16.msra.mxu0 %v852
      %1966 = vmatprep.subr.bf16.mxu0 %v855
      %1967 = vmatpush1.bf16.msra.mxu0 %v854
      %1968 = vmatprep.mubr.bf16.mxu0 %v1833
      %1969 = vmatmul.mubr.bf16.gmra.mrb[0].mxu0 %v1832
      %v1970 = vpop.f32.mrb[0].mxu0
      %v1971 = vadd.f32 0.0, %v1970
      %v1972 = vpop.f32.mrb[0].mxu0
      %v1973 = vadd.f32 0.0, %v1972
      %v1974 = vpop.f32.mrb[0].mxu0
      %v1975 = vadd.f32 0.0, %v1974
      %v1976 = vpop.f32.mrb[0].mxu0
      %v1977 = vadd.f32 0.0, %v1976
      %1978 = vmatprep.mubr.bf16.mxu0 %v1837
      %1979 = vmatmul.mubr.bf16.gmra.mrb[0].mxu0 %v1836
      %v1980 = vpop.f32.mrb[0].mxu0
      %v1981 = vadd.f32 0.0, %v1980
      %v1982 = vpop.f32.mrb[0].mxu0
      %v1983 = vadd.f32 0.0, %v1982
      %v1984 = vpop.f32.mrb[0].mxu0
      %v1985 = vadd.f32 0.0, %v1984
      %v1986 = vpop.f32.mrb[0].mxu0
      %v1987 = vadd.f32 0.0, %v1986
      %1988 = vmatprep.mubr.bf16.mxu0 %v1841
      %1989 = vmatmul.mubr.bf16.gmra.mrb[0].mxu0 %v1840
      %v1990 = vpop.f32.mrb[0].mxu0
      %v1991 = vadd.f32 0.0, %v1990
      %v1992 = vpop.f32.mrb[0].mxu0
      %v1993 = vadd.f32 0.0, %v1992
      %v1994 = vpop.f32.mrb[0].mxu0
      %v1995 = vadd.f32 0.0, %v1994
      %v1996 = vpop.f32.mrb[0].mxu0
      %v1997 = vadd.f32 0.0, %v1996
      %1998 = vmatprep.mubr.bf16.mxu0 %v1845
      %1999 = vmatmul.mubr.bf16.gmra.mrb[0].mxu0 %v1844
      %v2000 = vpop.f32.mrb[0].mxu0
      %v2001 = vadd.f32 0.0, %v2000
      %v2002 = vpop.f32.mrb[0].mxu0
      %v2003 = vadd.f32 0.0, %v2002
      %v2004 = vpop.f32.mrb[0].mxu0
      %v2005 = vadd.f32 0.0, %v2004
      %v2006 = vpop.f32.mrb[0].mxu0
      %v2007 = vadd.f32 0.0, %v2006
      %2008 = vmatprep.mubr.bf16.mxu0 %v1849
      %2009 = vmatmul.mubr.bf16.gmra.mrb[0].mxu0 %v1848
      %v2010 = vpop.f32.mrb[0].mxu0
      %v2011 = vadd.f32 0.0, %v2010
      %v2012 = vpop.f32.mrb[0].mxu0
      %v2013 = vadd.f32 0.0, %v2012
      %v2014 = vpop.f32.mrb[0].mxu0
      %v2015 = vadd.f32 0.0, %v2014
      %v2016 = vpop.f32.mrb[0].mxu0
      %v2017 = vadd.f32 0.0, %v2016
      %2018 = vmatprep.mubr.bf16.mxu0 %v1853
      %2019 = vmatmul.mubr.bf16.gmra.mrb[0].mxu0 %v1852
      %v2020 = vpop.f32.mrb[0].mxu0
      %v2021 = vadd.f32 0.0, %v2020
      %v2022 = vpop.f32.mrb[0].mxu0
      %v2023 = vadd.f32 0.0, %v2022
      %v2024 = vpop.f32.mrb[0].mxu0
      %v2025 = vadd.f32 0.0, %v2024
      %v2026 = vpop.f32.mrb[0].mxu0
      %v2027 = vadd.f32 0.0, %v2026
      %2028 = vmatprep.mubr.bf16.mxu0 %v1857
      %2029 = vmatmul.mubr.bf16.gmra.mrb[0].mxu0 %v1856
      %v2030 = vpop.f32.mrb[0].mxu0
      %v2031 = vadd.f32 0.0, %v2030
      %v2032 = vpop.f32.mrb[0].mxu0
      %v2033 = vadd.f32 0.0, %v2032
      %v2034 = vpop.f32.mrb[0].mxu0
      %v2035 = vadd.f32 0.0, %v2034
      %v2036 = vpop.f32.mrb[0].mxu0
      %v2037 = vadd.f32 0.0, %v2036
      %2038 = vmatprep.mubr.bf16.mxu0 %v1861
      %2039 = vmatmul.mubr.bf16.gmra.mrb[0].mxu0 %v1860
      %v2040 = vpop.f32.mrb[0].mxu0
      %v2041 = vadd.f32 0.0, %v2040
      %v2042 = vpop.f32.mrb[0].mxu0
      %v2043 = vadd.f32 0.0, %v2042
      %v2044 = vpop.f32.mrb[0].mxu0
      %v2045 = vadd.f32 0.0, %v2044
      %v2046 = vpop.f32.mrb[0].mxu0
      %v2047 = vadd.f32 0.0, %v2046
      %2048 = vmatprep.mubr.bf16.mxu0 %v1865
      %2049 = vmatmul.mubr.bf16.gmra.mrb[0].mxu0 %v1864
      %v2050 = vpop.f32.mrb[0].mxu0
      %v2051 = vadd.f32 0.0, %v2050
      %v2052 = vpop.f32.mrb[0].mxu0
      %v2053 = vadd.f32 0.0, %v2052
      %v2054 = vpop.f32.mrb[0].mxu0
      %v2055 = vadd.f32 0.0, %v2054
      %v2056 = vpop.f32.mrb[0].mxu0
      %v2057 = vadd.f32 0.0, %v2056
      %2058 = vmatprep.mubr.bf16.mxu0 %v1869
      %2059 = vmatmul.mubr.bf16.gmra.mrb[0].mxu0 %v1868
      %v2060 = vpop.f32.mrb[0].mxu0
      %v2061 = vadd.f32 0.0, %v2060
      %v2062 = vpop.f32.mrb[0].mxu0
      %v2063 = vadd.f32 0.0, %v2062
      %v2064 = vpop.f32.mrb[0].mxu0
      %v2065 = vadd.f32 0.0, %v2064
      %v2066 = vpop.f32.mrb[0].mxu0
      %v2067 = vadd.f32 0.0, %v2066
      %2068 = vmatprep.mubr.bf16.mxu0 %v1873
      %2069 = vmatmul.mubr.bf16.gmra.mrb[0].mxu0 %v1872
      %v2070 = vpop.f32.mrb[0].mxu0
      %v2071 = vadd.f32 0.0, %v2070
      %v2072 = vpop.f32.mrb[0].mxu0
      %v2073 = vadd.f32 0.0, %v2072
      %v2074 = vpop.f32.mrb[0].mxu0
      %v2075 = vadd.f32 0.0, %v2074
      %v2076 = vpop.f32.mrb[0].mxu0
      %v2077 = vadd.f32 0.0, %v2076
      %2078 = vmatprep.mubr.bf16.mxu0 %v1877
      %2079 = vmatmul.mubr.bf16.gmra.mrb[0].mxu0 %v1876
      %v2080 = vpop.f32.mrb[0].mxu0
      %v2081 = vadd.f32 0.0, %v2080
      %v2082 = vpop.f32.mrb[0].mxu0
      %v2083 = vadd.f32 0.0, %v2082
      %v2084 = vpop.f32.mrb[0].mxu0
      %v2085 = vadd.f32 0.0, %v2084
      %v2086 = vpop.f32.mrb[0].mxu0
      %v2087 = vadd.f32 0.0, %v2086
      %2088 = vmatprep.mubr.bf16.mxu0 %v1881
      %2089 = vmatmul.mubr.bf16.gmra.mrb[0].mxu0 %v1880
      %v2090 = vpop.f32.mrb[0].mxu0
      %v2091 = vadd.f32 0.0, %v2090
      %v2092 = vpop.f32.mrb[0].mxu0
      %v2093 = vadd.f32 0.0, %v2092
      %v2094 = vpop.f32.mrb[0].mxu0
      %v2095 = vadd.f32 0.0, %v2094
      %v2096 = vpop.f32.mrb[0].mxu0
      %v2097 = vadd.f32 0.0, %v2096
      %2098 = vdwg.mxu0
      %2099 = vmatprep.subr.bf16.mxu0 %v857
      %2100 = vmatpush1.bf16.msra.mxu0 %v856
      %2101 = vmatprep.subr.bf16.mxu0 %v859
      %2102 = vmatpush1.bf16.msra.mxu0 %v858
      %2103 = vmatprep.subr.bf16.mxu0 %v861
      %2104 = vmatpush1.bf16.msra.mxu0 %v860
      %2105 = vmatprep.subr.bf16.mxu0 %v863
      %2106 = vmatpush1.bf16.msra.mxu0 %v862
      %2107 = vmatprep.subr.bf16.mxu0 %v865
      %2108 = vmatpush1.bf16.msra.mxu0 %v864
      %2109 = vmatprep.subr.bf16.mxu0 %v867
      %2110 = vmatpush1.bf16.msra.mxu0 %v866
      %2111 = vmatprep.subr.bf16.mxu0 %v869
      %2112 = vmatpush1.bf16.msra.mxu0 %v868
      %2113 = vmatprep.subr.bf16.mxu0 %v871
      %2114 = vmatpush1.bf16.msra.mxu0 %v870
      %2115 = vmatprep.subr.bf16.mxu0 %v873
      %2116 = vmatpush1.bf16.msra.mxu0 %v872
      %2117 = vmatprep.subr.bf16.mxu0 %v875
      %2118 = vmatpush1.bf16.msra.mxu0 %v874
      %2119 = vmatprep.subr.bf16.mxu0 %v877
      %2120 = vmatpush1.bf16.msra.mxu0 %v876
      %2121 = vmatprep.subr.bf16.mxu0 %v879
      %2122 = vmatpush1.bf16.msra.mxu0 %v878
      %2123 = vmatprep.subr.bf16.mxu0 %v881
      %2124 = vmatpush1.bf16.msra.mxu0 %v880
      %2125 = vmatprep.subr.bf16.mxu0 %v883
      %2126 = vmatpush1.bf16.msra.mxu0 %v882
      %2127 = vmatprep.subr.bf16.mxu0 %v885
      %2128 = vmatpush1.bf16.msra.mxu0 %v884
      %2129 = vmatprep.subr.bf16.mxu0 %v887
      %2130 = vmatpush1.bf16.msra.mxu0 %v886
      %2131 = vmatprep.mubr.bf16.mxu0 %v1835
      %2132 = vmatmul.mubr.bf16.gmra.mrb[0].mxu0 %v1834
      %v2133 = vpop.f32.mrb[0].mxu0
      %v2134 = vadd.f32 %v1971, %v2133
      %v2135 = vpop.f32.mrb[0].mxu0
      %v2136 = vadd.f32 %v1973, %v2135
      %v2137 = vpop.f32.mrb[0].mxu0
      %v2138 = vadd.f32 %v1975, %v2137
      %v2139 = vpop.f32.mrb[0].mxu0
      %v2140 = vadd.f32 %v1977, %v2139
      %2141 = vmatprep.mubr.bf16.mxu0 %v1839
      %2142 = vmatmul.mubr.bf16.gmra.mrb[0].mxu0 %v1838
      %v2143 = vpop.f32.mrb[0].mxu0
      %v2144 = vadd.f32 %v1981, %v2143
      %v2145 = vpop.f32.mrb[0].mxu0
      %v2146 = vadd.f32 %v1983, %v2145
      %v2147 = vpop.f32.mrb[0].mxu0
      %v2148 = vadd.f32 %v1985, %v2147
      %v2149 = vpop.f32.mrb[0].mxu0
      %v2150 = vadd.f32 %v1987, %v2149
      %2151 = vmatprep.mubr.bf16.mxu0 %v1843
      %2152 = vmatmul.mubr.bf16.gmra.mrb[0].mxu0 %v1842
      %v2153 = vpop.f32.mrb[0].mxu0
      %v2154 = vadd.f32 %v1991, %v2153
      %v2155 = vpop.f32.mrb[0].mxu0
      %v2156 = vadd.f32 %v1993, %v2155
      %v2157 = vpop.f32.mrb[0].mxu0
      %v2158 = vadd.f32 %v1995, %v2157
      %v2159 = vpop.f32.mrb[0].mxu0
      %v2160 = vadd.f32 %v1997, %v2159
      %2161 = vmatprep.mubr.bf16.mxu0 %v1847
      %2162 = vmatmul.mubr.bf16.gmra.mrb[0].mxu0 %v1846
      %v2163 = vpop.f32.mrb[0].mxu0
      %v2164 = vadd.f32 %v2001, %v2163
      %v2165 = vpop.f32.mrb[0].mxu0
      %v2166 = vadd.f32 %v2003, %v2165
      %v2167 = vpop.f32.mrb[0].mxu0
      %v2168 = vadd.f32 %v2005, %v2167
      %v2169 = vpop.f32.mrb[0].mxu0
      %v2170 = vadd.f32 %v2007, %v2169
      %2171 = vmatprep.mubr.bf16.mxu0 %v1851
      %2172 = vmatmul.mubr.bf16.gmra.mrb[0].mxu0 %v1850
      %v2173 = vpop.f32.mrb[0].mxu0
      %v2174 = vadd.f32 %v2011, %v2173
      %v2175 = vpop.f32.mrb[0].mxu0
      %v2176 = vadd.f32 %v2013, %v2175
      %v2177 = vpop.f32.mrb[0].mxu0
      %v2178 = vadd.f32 %v2015, %v2177
      %v2179 = vpop.f32.mrb[0].mxu0
      %v2180 = vadd.f32 %v2017, %v2179
      %2181 = vmatprep.mubr.bf16.mxu0 %v1855
      %2182 = vmatmul.mubr.bf16.gmra.mrb[0].mxu0 %v1854
      %v2183 = vpop.f32.mrb[0].mxu0
      %v2184 = vadd.f32 %v2021, %v2183
      %v2185 = vpop.f32.mrb[0].mxu0
      %v2186 = vadd.f32 %v2023, %v2185
      %v2187 = vpop.f32.mrb[0].mxu0
      %v2188 = vadd.f32 %v2025, %v2187
      %v2189 = vpop.f32.mrb[0].mxu0
      %v2190 = vadd.f32 %v2027, %v2189
      %2191 = vmatprep.mubr.bf16.mxu0 %v1859
      %2192 = vmatmul.mubr.bf16.gmra.mrb[0].mxu0 %v1858
      %v2193 = vpop.f32.mrb[0].mxu0
      %v2194 = vadd.f32 %v2031, %v2193
      %v2195 = vpop.f32.mrb[0].mxu0
      %v2196 = vadd.f32 %v2033, %v2195
      %v2197 = vpop.f32.mrb[0].mxu0
      %v2198 = vadd.f32 %v2035, %v2197
      %v2199 = vpop.f32.mrb[0].mxu0
      %v2200 = vadd.f32 %v2037, %v2199
      %2201 = vmatprep.mubr.bf16.mxu0 %v1863
      %2202 = vmatmul.mubr.bf16.gmra.mrb[0].mxu0 %v1862
      %v2203 = vpop.f32.mrb[0].mxu0
      %v2204 = vadd.f32 %v2041, %v2203
      %v2205 = vpop.f32.mrb[0].mxu0
      %v2206 = vadd.f32 %v2043, %v2205
      %v2207 = vpop.f32.mrb[0].mxu0
      %v2208 = vadd.f32 %v2045, %v2207
      %v2209 = vpop.f32.mrb[0].mxu0
      %v2210 = vadd.f32 %v2047, %v2209
      %2211 = vmatprep.mubr.bf16.mxu0 %v1867
      %2212 = vmatmul.mubr.bf16.gmra.mrb[0].mxu0 %v1866
      %v2213 = vpop.f32.mrb[0].mxu0
      %v2214 = vadd.f32 %v2051, %v2213
      %v2215 = vpop.f32.mrb[0].mxu0
      %v2216 = vadd.f32 %v2053, %v2215
      %v2217 = vpop.f32.mrb[0].mxu0
      %v2218 = vadd.f32 %v2055, %v2217
      %v2219 = vpop.f32.mrb[0].mxu0
      %v2220 = vadd.f32 %v2057, %v2219
      %2221 = vmatprep.mubr.bf16.mxu0 %v1871
      %2222 = vmatmul.mubr.bf16.gmra.mrb[0].mxu0 %v1870
      %v2223 = vpop.f32.mrb[0].mxu0
      %v2224 = vadd.f32 %v2061, %v2223
      %v2225 = vpop.f32.mrb[0].mxu0
      %v2226 = vadd.f32 %v2063, %v2225
      %v2227 = vpop.f32.mrb[0].mxu0
      %v2228 = vadd.f32 %v2065, %v2227
      %v2229 = vpop.f32.mrb[0].mxu0
      %v2230 = vadd.f32 %v2067, %v2229
      %2231 = vmatprep.mubr.bf16.mxu0 %v1875
      %2232 = vmatmul.mubr.bf16.gmra.mrb[0].mxu0 %v1874
      %v2233 = vpop.f32.mrb[0].mxu0
      %v2234 = vadd.f32 %v2071, %v2233
      %v2235 = vpop.f32.mrb[0].mxu0
      %v2236 = vadd.f32 %v2073, %v2235
      %v2237 = vpop.f32.mrb[0].mxu0
      %v2238 = vadd.f32 %v2075, %v2237
      %v2239 = vpop.f32.mrb[0].mxu0
      %v2240 = vadd.f32 %v2077, %v2239
      %2241 = vmatprep.mubr.bf16.mxu0 %v1879
      %2242 = vmatmul.mubr.bf16.gmra.mrb[0].mxu0 %v1878
      %v2243 = vpop.f32.mrb[0].mxu0
      %v2244 = vadd.f32 %v2081, %v2243
      %v2245 = vpop.f32.mrb[0].mxu0
      %v2246 = vadd.f32 %v2083, %v2245
      %v2247 = vpop.f32.mrb[0].mxu0
      %v2248 = vadd.f32 %v2085, %v2247
      %v2249 = vpop.f32.mrb[0].mxu0
      %v2250 = vadd.f32 %v2087, %v2249
      %2251 = vmatprep.mubr.bf16.mxu0 %v1883
      %2252 = vmatmul.mubr.bf16.gmra.mrb[0].mxu0 %v1882
      %v2253 = vpop.f32.mrb[0].mxu0
      %v2254 = vadd.f32 %v2091, %v2253
      %v2255 = vpop.f32.mrb[0].mxu0
      %v2256 = vadd.f32 %v2093, %v2255
      %v2257 = vpop.f32.mrb[0].mxu0
      %v2258 = vadd.f32 %v2095, %v2257
      %v2259 = vpop.f32.mrb[0].mxu0
      %v2260 = vadd.f32 %v2097, %v2259
      %2261 = vdwg.mxu0
      %v2262 = vmul.f32 %v2134, %v2134
      %v2263 = vmul.f32 %v2138, %v2138
      %v2264 = vmul.f32 %v2144, %v2144
      %v2265 = vmul.f32 %v2148, %v2148
      %v2266 = vmul.f32 %v2154, %v2154
      %v2267 = vmul.f32 %v2158, %v2158
      %v2268 = vmul.f32 %v2164, %v2164
      %v2269 = vmul.f32 %v2168, %v2168
      %v2270 = vmul.f32 %v2174, %v2174
      %v2271 = vmul.f32 %v2178, %v2178
      %v2272 = vmul.f32 %v2184, %v2184
      %v2273 = vmul.f32 %v2188, %v2188
      %v2274 = vmul.f32 %v2194, %v2194
      %v2275 = vmul.f32 %v2198, %v2198
      %v2276 = vmul.f32 %v2204, %v2204
      %v2277 = vmul.f32 %v2208, %v2208
      %v2278 = vmul.f32 %v2214, %v2214
      %v2279 = vmul.f32 %v2218, %v2218
      %v2280 = vmul.f32 %v2224, %v2224
      %v2281 = vmul.f32 %v2228, %v2228
      %v2282 = vmul.f32 %v2234, %v2234
      %v2283 = vmul.f32 %v2238, %v2238
      %v2284 = vmul.f32 %v2244, %v2244
      %v2285 = vmul.f32 %v2248, %v2248
      %v2286 = vmul.f32 %v2254, %v2254
      %v2287 = vmul.f32 %v2258, %v2258
      %v2288 = vmul.f32 %v2136, %v2136
      %v2289 = vmul.f32 %v2140, %v2140
      %v2290 = vmul.f32 %v2146, %v2146
      %v2291 = vmul.f32 %v2150, %v2150
      %v2292 = vmul.f32 %v2156, %v2156
      %v2293 = vmul.f32 %v2160, %v2160
      %v2294 = vmul.f32 %v2166, %v2166
      %v2295 = vmul.f32 %v2170, %v2170
      %v2296 = vmul.f32 %v2176, %v2176
      %v2297 = vmul.f32 %v2180, %v2180
      %v2298 = vmul.f32 %v2186, %v2186
      %v2299 = vmul.f32 %v2190, %v2190
      %v2300 = vmul.f32 %v2196, %v2196
      %v2301 = vmul.f32 %v2200, %v2200
      %v2302 = vmul.f32 %v2206, %v2206
      %v2303 = vmul.f32 %v2210, %v2210
      %v2304 = vmul.f32 %v2216, %v2216
      %v2305 = vmul.f32 %v2220, %v2220
      %v2306 = vmul.f32 %v2226, %v2226
      %v2307 = vmul.f32 %v2230, %v2230
      %v2308 = vmul.f32 %v2236, %v2236
      %v2309 = vmul.f32 %v2240, %v2240
      %v2310 = vmul.f32 %v2246, %v2246
      %v2311 = vmul.f32 %v2250, %v2250
      %v2312 = vmul.f32 %v2256, %v2256
      %v2313 = vmul.f32 %v2260, %v2260
      %v2314 = vadd.f32 %v2262, %v2288
      %v2315 = vadd.f32 %v2263, %v2289
      %v2316 = vadd.f32 %v2264, %v2290
      %v2317 = vadd.f32 %v2265, %v2291
      %v2318 = vadd.f32 %v2266, %v2292
      %v2319 = vadd.f32 %v2267, %v2293
      %v2320 = vadd.f32 %v2268, %v2294
      %v2321 = vadd.f32 %v2269, %v2295
      %v2322 = vadd.f32 %v2270, %v2296
      %v2323 = vadd.f32 %v2271, %v2297
      %v2324 = vadd.f32 %v2272, %v2298
      %v2325 = vadd.f32 %v2273, %v2299
      %v2326 = vadd.f32 %v2274, %v2300
      %v2327 = vadd.f32 %v2275, %v2301
      %v2328 = vadd.f32 %v2276, %v2302
      %v2329 = vadd.f32 %v2277, %v2303
      %v2330 = vadd.f32 %v2278, %v2304
      %v2331 = vadd.f32 %v2279, %v2305
      %v2332 = vadd.f32 %v2280, %v2306
      %v2333 = vadd.f32 %v2281, %v2307
      %v2334 = vadd.f32 %v2282, %v2308
      %v2335 = vadd.f32 %v2283, %v2309
      %v2336 = vadd.f32 %v2284, %v2310
      %v2337 = vadd.f32 %v2285, %v2311
      %v2338 = vadd.f32 %v2286, %v2312
      %v2339 = vadd.f32 %v2287, %v2313
      %v2340 = vrsqrt.pop %v2314
      %v2341 = vmul.f32 %v2314, %v2340
      %vm2342 = vcmp.eq.f32.partialorder %v2314, inf
      %v2343 = vsel %vm2342, %v2314, %v2341
      %vm2344 = vcmp.eq.f32.partialorder %v2314, 0.0
      %v2345 = vand.u32 %v2314, 2147483648
      %v2346 = vsel %vm2344, %v2345, %v2343
      %v2347 = vrsqrt.pop %v2315
      %v2348 = vmul.f32 %v2315, %v2347
      %vm2349 = vcmp.eq.f32.partialorder %v2315, inf
      %v2350 = vsel %vm2349, %v2315, %v2348
      %vm2351 = vcmp.eq.f32.partialorder %v2315, 0.0
      %v2352 = vand.u32 %v2315, 2147483648
      %v2353 = vsel %vm2351, %v2352, %v2350
      %v2354 = vrsqrt.pop %v2316
      %v2355 = vmul.f32 %v2316, %v2354
      %vm2356 = vcmp.eq.f32.partialorder %v2316, inf
      %v2357 = vsel %vm2356, %v2316, %v2355
      %vm2358 = vcmp.eq.f32.partialorder %v2316, 0.0
      %v2359 = vand.u32 %v2316, 2147483648
      %v2360 = vsel %vm2358, %v2359, %v2357
      %v2361 = vrsqrt.pop %v2317
      %v2362 = vmul.f32 %v2317, %v2361
      %vm2363 = vcmp.eq.f32.partialorder %v2317, inf
      %v2364 = vsel %vm2363, %v2317, %v2362
      %vm2365 = vcmp.eq.f32.partialorder %v2317, 0.0
      %v2366 = vand.u32 %v2317, 2147483648
      %v2367 = vsel %vm2365, %v2366, %v2364
      %v2368 = vrsqrt.pop %v2318
      %v2369 = vmul.f32 %v2318, %v2368
      %vm2370 = vcmp.eq.f32.partialorder %v2318, inf
      %v2371 = vsel %vm2370, %v2318, %v2369
      %vm2372 = vcmp.eq.f32.partialorder %v2318, 0.0
      %v2373 = vand.u32 %v2318, 2147483648
      %v2374 = vsel %vm2372, %v2373, %v2371
      %v2375 = vrsqrt.pop %v2319
      %v2376 = vmul.f32 %v2319, %v2375
      %vm2377 = vcmp.eq.f32.partialorder %v2319, inf
      %v2378 = vsel %vm2377, %v2319, %v2376
      %vm2379 = vcmp.eq.f32.partialorder %v2319, 0.0
      %v2380 = vand.u32 %v2319, 2147483648
      %v2381 = vsel %vm2379, %v2380, %v2378
      %v2382 = vrsqrt.pop %v2320
      %v2383 = vmul.f32 %v2320, %v2382
      %vm2384 = vcmp.eq.f32.partialorder %v2320, inf
      %v2385 = vsel %vm2384, %v2320, %v2383
      %vm2386 = vcmp.eq.f32.partialorder %v2320, 0.0
      %v2387 = vand.u32 %v2320, 2147483648
      %v2388 = vsel %vm2386, %v2387, %v2385
      %v2389 = vrsqrt.pop %v2321
      %v2390 = vmul.f32 %v2321, %v2389
      %vm2391 = vcmp.eq.f32.partialorder %v2321, inf
      %v2392 = vsel %vm2391, %v2321, %v2390
      %vm2393 = vcmp.eq.f32.partialorder %v2321, 0.0
      %v2394 = vand.u32 %v2321, 2147483648
      %v2395 = vsel %vm2393, %v2394, %v2392
      %v2396 = vrsqrt.pop %v2322
      %v2397 = vmul.f32 %v2322, %v2396
      %vm2398 = vcmp.eq.f32.partialorder %v2322, inf
      %v2399 = vsel %vm2398, %v2322, %v2397
      %vm2400 = vcmp.eq.f32.partialorder %v2322, 0.0
      %v2401 = vand.u32 %v2322, 2147483648
      %v2402 = vsel %vm2400, %v2401, %v2399
      %v2403 = vrsqrt.pop %v2323
      %v2404 = vmul.f32 %v2323, %v2403
      %vm2405 = vcmp.eq.f32.partialorder %v2323, inf
      %v2406 = vsel %vm2405, %v2323, %v2404
      %vm2407 = vcmp.eq.f32.partialorder %v2323, 0.0
      %v2408 = vand.u32 %v2323, 2147483648
      %v2409 = vsel %vm2407, %v2408, %v2406
      %v2410 = vrsqrt.pop %v2324
      %v2411 = vmul.f32 %v2324, %v2410
      %vm2412 = vcmp.eq.f32.partialorder %v2324, inf
      %v2413 = vsel %vm2412, %v2324, %v2411
      %vm2414 = vcmp.eq.f32.partialorder %v2324, 0.0
      %v2415 = vand.u32 %v2324, 2147483648
      %v2416 = vsel %vm2414, %v2415, %v2413
      %v2417 = vrsqrt.pop %v2325
      %v2418 = vmul.f32 %v2325, %v2417
      %vm2419 = vcmp.eq.f32.partialorder %v2325, inf
      %v2420 = vsel %vm2419, %v2325, %v2418
      %vm2421 = vcmp.eq.f32.partialorder %v2325, 0.0
      %v2422 = vand.u32 %v2325, 2147483648
      %v2423 = vsel %vm2421, %v2422, %v2420
      %v2424 = vrsqrt.pop %v2326
      %v2425 = vmul.f32 %v2326, %v2424
      %vm2426 = vcmp.eq.f32.partialorder %v2326, inf
      %v2427 = vsel %vm2426, %v2326, %v2425
      %vm2428 = vcmp.eq.f32.partialorder %v2326, 0.0
      %v2429 = vand.u32 %v2326, 2147483648
      %v2430 = vsel %vm2428, %v2429, %v2427
      %v2431 = vrsqrt.pop %v2327
      %v2432 = vmul.f32 %v2327, %v2431
      %vm2433 = vcmp.eq.f32.partialorder %v2327, inf
      %v2434 = vsel %vm2433, %v2327, %v2432
      %vm2435 = vcmp.eq.f32.partialorder %v2327, 0.0
      %v2436 = vand.u32 %v2327, 2147483648
      %v2437 = vsel %vm2435, %v2436, %v2434
      %v2438 = vrsqrt.pop %v2328
      %v2439 = vmul.f32 %v2328, %v2438
      %vm2440 = vcmp.eq.f32.partialorder %v2328, inf
      %v2441 = vsel %vm2440, %v2328, %v2439
      %vm2442 = vcmp.eq.f32.partialorder %v2328, 0.0
      %v2443 = vand.u32 %v2328, 2147483648
      %v2444 = vsel %vm2442, %v2443, %v2441
      %v2445 = vrsqrt.pop %v2329
      %v2446 = vmul.f32 %v2329, %v2445
      %vm2447 = vcmp.eq.f32.partialorder %v2329, inf
      %v2448 = vsel %vm2447, %v2329, %v2446
      %vm2449 = vcmp.eq.f32.partialorder %v2329, 0.0
      %v2450 = vand.u32 %v2329, 2147483648
      %v2451 = vsel %vm2449, %v2450, %v2448
      %v2452 = vrsqrt.pop %v2330
      %v2453 = vmul.f32 %v2330, %v2452
      %vm2454 = vcmp.eq.f32.partialorder %v2330, inf
      %v2455 = vsel %vm2454, %v2330, %v2453
      %vm2456 = vcmp.eq.f32.partialorder %v2330, 0.0
      %v2457 = vand.u32 %v2330, 2147483648
      %v2458 = vsel %vm2456, %v2457, %v2455
      %v2459 = vrsqrt.pop %v2331
      %v2460 = vmul.f32 %v2331, %v2459
      %vm2461 = vcmp.eq.f32.partialorder %v2331, inf
      %v2462 = vsel %vm2461, %v2331, %v2460
      %vm2463 = vcmp.eq.f32.partialorder %v2331, 0.0
      %v2464 = vand.u32 %v2331, 2147483648
      %v2465 = vsel %vm2463, %v2464, %v2462
      %v2466 = vrsqrt.pop %v2332
      %v2467 = vmul.f32 %v2332, %v2466
      %vm2468 = vcmp.eq.f32.partialorder %v2332, inf
      %v2469 = vsel %vm2468, %v2332, %v2467
      %vm2470 = vcmp.eq.f32.partialorder %v2332, 0.0
      %v2471 = vand.u32 %v2332, 2147483648
      %v2472 = vsel %vm2470, %v2471, %v2469
      %v2473 = vrsqrt.pop %v2333
      %v2474 = vmul.f32 %v2333, %v2473
      %vm2475 = vcmp.eq.f32.partialorder %v2333, inf
      %v2476 = vsel %vm2475, %v2333, %v2474
      %vm2477 = vcmp.eq.f32.partialorder %v2333, 0.0
      %v2478 = vand.u32 %v2333, 2147483648
      %v2479 = vsel %vm2477, %v2478, %v2476
      %v2480 = vrsqrt.pop %v2334
      %v2481 = vmul.f32 %v2334, %v2480
      %vm2482 = vcmp.eq.f32.partialorder %v2334, inf
      %v2483 = vsel %vm2482, %v2334, %v2481
      %vm2484 = vcmp.eq.f32.partialorder %v2334, 0.0
      %v2485 = vand.u32 %v2334, 2147483648
      %v2486 = vsel %vm2484, %v2485, %v2483
      %v2487 = vrsqrt.pop %v2335
      %v2488 = vmul.f32 %v2335, %v2487
      %vm2489 = vcmp.eq.f32.partialorder %v2335, inf
      %v2490 = vsel %vm2489, %v2335, %v2488
      %vm2491 = vcmp.eq.f32.partialorder %v2335, 0.0
      %v2492 = vand.u32 %v2335, 2147483648
      %v2493 = vsel %vm2491, %v2492, %v2490
      %v2494 = vrsqrt.pop %v2336
      %v2495 = vmul.f32 %v2336, %v2494
      %vm2496 = vcmp.eq.f32.partialorder %v2336, inf
      %v2497 = vsel %vm2496, %v2336, %v2495
      %vm2498 = vcmp.eq.f32.partialorder %v2336, 0.0
      %v2499 = vand.u32 %v2336, 2147483648
      %v2500 = vsel %vm2498, %v2499, %v2497
      %v2501 = vrsqrt.pop %v2337
      %v2502 = vmul.f32 %v2337, %v2501
      %vm2503 = vcmp.eq.f32.partialorder %v2337, inf
      %v2504 = vsel %vm2503, %v2337, %v2502
      %vm2505 = vcmp.eq.f32.partialorder %v2337, 0.0
      %v2506 = vand.u32 %v2337, 2147483648
      %v2507 = vsel %vm2505, %v2506, %v2504
      %v2508 = vrsqrt.pop %v2338
      %v2509 = vmul.f32 %v2338, %v2508
      %vm2510 = vcmp.eq.f32.partialorder %v2338, inf
      %v2511 = vsel %vm2510, %v2338, %v2509
      %vm2512 = vcmp.eq.f32.partialorder %v2338, 0.0
      %v2513 = vand.u32 %v2338, 2147483648
      %v2514 = vsel %vm2512, %v2513, %v2511
      %v2515 = vrsqrt.pop %v2339
      %v2516 = vmul.f32 %v2339, %v2515
      %vm2517 = vcmp.eq.f32.partialorder %v2339, inf
      %v2518 = vsel %vm2517, %v2339, %v2516
      %vm2519 = vcmp.eq.f32.partialorder %v2339, 0.0
      %v2520 = vand.u32 %v2339, 2147483648
      %v2521 = vsel %vm2519, %v2520, %v2518
      %v2522 = vmin.f32 %v2346, 10000.0
      %v2523 = vmin.f32 %v2353, 10000.0
      %v2524 = vmin.f32 %v2360, 10000.0
      %v2525 = vmin.f32 %v2367, 10000.0
      %v2526 = vmin.f32 %v2374, 10000.0
      %v2527 = vmin.f32 %v2381, 10000.0
      %v2528 = vmin.f32 %v2388, 10000.0
      %v2529 = vmin.f32 %v2395, 10000.0
      %v2530 = vmin.f32 %v2402, 10000.0
      %v2531 = vmin.f32 %v2409, 10000.0
      %v2532 = vmin.f32 %v2416, 10000.0
      %v2533 = vmin.f32 %v2423, 10000.0
      %v2534 = vmin.f32 %v2430, 10000.0
      %v2535 = vmin.f32 %v2437, 10000.0
      %v2536 = vmin.f32 %v2444, 10000.0
      %v2537 = vmin.f32 %v2451, 10000.0
      %v2538 = vmin.f32 %v2458, 10000.0
      %v2539 = vmin.f32 %v2465, 10000.0
      %v2540 = vmin.f32 %v2472, 10000.0
      %v2541 = vmin.f32 %v2479, 10000.0
      %v2542 = vmin.f32 %v2486, 10000.0
      %v2543 = vmin.f32 %v2493, 10000.0
      %v2544 = vmin.f32 %v2500, 10000.0
      %v2545 = vmin.f32 %v2507, 10000.0
      %v2546 = vmin.f32 %v2514, 10000.0
      %v2547 = vmin.f32 %v2521, 10000.0
      %v2548 = vmul.f32 %v2522, 0.001
      %v2549 = vmul.f32 %v2523, 0.001
      %v2550 = vmul.f32 %v2524, 0.001
      %v2551 = vmul.f32 %v2525, 0.001
      %v2552 = vmul.f32 %v2526, 0.001
      %v2553 = vmul.f32 %v2527, 0.001
      %v2554 = vmul.f32 %v2528, 0.001
      %v2555 = vmul.f32 %v2529, 0.001
      %v2556 = vmul.f32 %v2530, 0.001
      %v2557 = vmul.f32 %v2531, 0.001
      %v2558 = vmul.f32 %v2532, 0.001
      %v2559 = vmul.f32 %v2533, 0.001
      %v2560 = vmul.f32 %v2534, 0.001
      %v2561 = vmul.f32 %v2535, 0.001
      %v2562 = vmul.f32 %v2536, 0.001
      %v2563 = vmul.f32 %v2537, 0.001
      %v2564 = vmul.f32 %v2538, 0.001
      %v2565 = vmul.f32 %v2539, 0.001
      %v2566 = vmul.f32 %v2540, 0.001
      %v2567 = vmul.f32 %v2541, 0.001
      %v2568 = vmul.f32 %v2542, 0.001
      %v2569 = vmul.f32 %v2543, 0.001
      %v2570 = vmul.f32 %v2544, 0.001
      %v2571 = vmul.f32 %v2545, 0.001
      %v2572 = vmul.f32 %v2546, 0.001
      %v2573 = vmul.f32 %v2547, 0.001
      %v2574 = vadd.f32 %v2548, %v2549
      %v2575 = vadd.f32 %v2574, %v2550
      %v2576 = vadd.f32 %v2575, %v2551
      %v2577 = vadd.f32 %v2576, %v2552
      %v2578 = vadd.f32 %v2577, %v2553
      %v2579 = vadd.f32 %v2578, %v2554
      %v2580 = vadd.f32 %v2579, %v2555
      %v2581 = vadd.f32 %v2580, %v2556
      %v2582 = vadd.f32 %v2581, %v2557
      %v2583 = vadd.f32 %v2582, %v2558
      %v2584 = vadd.f32 %v2583, %v2559
      %v2585 = vadd.f32 %v2584, %v2560
      %v2586 = vadd.f32 %v2585, %v2561
      %v2587 = vadd.f32 %v2586, %v2562
      %v2588 = vadd.f32 %v2587, %v2563
      %v2589 = vadd.f32 %v2588, %v2564
      %v2590 = vadd.f32 %v2589, %v2565
      %v2591 = vadd.f32 %v2590, %v2566
      %v2592 = vadd.f32 %v2591, %v2567
      %v2593 = vadd.f32 %v2592, %v2568
      %v2594 = vadd.f32 %v2593, %v2569
      %v2595 = vadd.f32 %v2594, %v2570
      %v2596 = vadd.f32 %v2595, %v2571
      %v2597 = vadd.f32 %v2596, %v2572
      %v2598 = vadd.f32 %v2597, %v2573
      %2599 = vadd.xlane.f32.xlu0 %v2598
      %v2600 = vpop.xlane.xlu0 %2599
      %v2601 = vrot.slane %v2600, 4
      %v2602 = vadd.f32 %v2600, %v2601
      %v2603 = vrot.slane %v2602, 2
      %v2604 = vadd.f32 %v2602, %v2603
      %v2605 = vrot.slane %v2604, 1
      %v2606 = vadd.f32 %v2604, %v2605
      %s2607 = vtos %v2606
      %s2608 = sadd.f32 %s1623, %s2607
      %v2609 = vstv %s2608
      %p2610 = scmp.eq.s32.totalorder %s20, 0
      // Predicated region
      $region37: #{net_forward.1} parent=35 // pred_check
        %p2611 = pneg %p2610
      $region38: #{net_forward.1} parent=35 // pred_check_branch
        %2613 = sbr.rel (%p2611) target = $region40
      $region39: #{net_forward.1} parent=35 // pred_region
        %2614 = vst [vmem:[%s255] sm:$0xff] %v2609
      $region40: #{net_forward.1} parent=35 // pred_fallthru
        _
      %p2615 = scmp.ne.s32.totalorder %s20, 0
      // Predicated region
      $region41: #{net_forward.1} parent=35 // pred_check
        %p2616 = pneg %p2615
      $region42: #{net_forward.1} parent=35 // pred_check_branch
        %2618 = sbr.rel (%p2616) target = $region44
      $region43: #{net_forward.1} parent=35 // pred_region
        %v2619 = vld [vmem:[%s255] sm:$0xff]
        %v2620 = vadd.f32 %v2619, %v2609
        %2621 = vst [vmem:[%s255] sm:$0xff] %v2620
      $region44: #{net_forward.1} parent=35 // pred_fallthru
        _
      %p2622 = scmp.eq.s32.totalorder %s20, 1
      // Predicated region
      $region45: #{net_forward.1} parent=35 // pred_check
        %p2623 = pneg %p2622
      $region46: #{net_forward.1} parent=35 // pred_check_branch
        %2625 = sbr.rel (%p2623) target = $region48
      $region47: #{net_forward.1} parent=35 // pred_region
        %v2626 = vld [vmem:[%s255] sm:$0xff]
        %v2627 = vmul.f32 %v2626, 2.0389854e-05
        %v2628 = vld [vmem:[%s3] sm:$0xff]
        %v2629 = vmul.f32 %v2627, %v2628
        %s2630 = scalar_lea.vmem %s3, 8
        %v2631 = vld [vmem:[%s2630] sm:$0xff]
        %v2632 = vadd.f32 %v2629, %v2631
        %2633 = vst [vmem:[%s255] sm:$0xff] %v2632
      $region48: #{net_forward.1} parent=35 // pred_fallthru
        _
      %p2634 = scmp.lt.s32.totalorder %s19, 1
      %s2635 = scalar_select %p2634, %s19, 1
      %s2636 = smul.addr %s2635, 8
      %s2637 = scalar_lea.vmem %s4, %s2636
      // Predicated region
      $region49: #{net_forward.1} parent=35 // pred_check
        %p2638 = pneg %p143
      $region50: #{net_forward.1} parent=35 // pred_check_branch
        %2640 = sbr.rel (%p2638) target = $region52
      $region51: #{net_forward.1} parent=35 // pred_region
        _
      $region52: #{net_forward.1} parent=35 // pred_fallthru
        _
    $region36: #{net_forward.1} parent=5 // pred_fallthru
      _
    %p2641 = scmp.le.s32.totalorder 2, %s10
    // Predicated region
    $region53: #{net_forward.1} parent=5 // pred_check
      %p2642 = pneg %p2641
    $region54: #{net_forward.1} parent=5 // pred_check_branch
      %2644 = sbr.rel (%p2642) target = $region56
    $region55: #{net_forward.1} parent=5 // pred_region
      %s2645 = ssub.s32 %s10, 2
      // Predicated region
      $region57: #{net_forward.1} parent=55 // pred_check
        %p2646 = pneg %p149
      $region58: #{net_forward.1} parent=55 // pred_check_branch
        %2648 = sbr.rel (%p2646) target = $region60
      $region59: #{net_forward.1} parent=55 // pred_region
        %p2649 = scmp.lt.s32.totalorder %s21, 1
        %s2650 = scalar_select %p2649, %s21, 1
        %s2651 = smul.addr %s2650, 8
        %s2652 = scalar_lea.vmem %s4, %s2651
      $region60: #{net_forward.1} parent=55 // pred_fallthru
        _
    $region56: #{net_forward.1} parent=5 // pred_fallthru
      _
  $region6: #{net_forward.1} parent=0 // loop_footer
    %s14 = sadd.s32 1, %s10
  $region7: #{net_forward.1} parent=0 // loop_footer_branch
    %9 = sbr.rel target = $region3
  $region8: #{net_forward.1} parent=0 // loop_exit
    _

</llo_original>
